<compile_context>
chip_gen: v5e
topology: v5e:2x2
jax: 0.10.0
libtpu: 0.0.40
codegen_flags: <defaults>
</compile_context>

<pallas_src>
import jax
import jax.numpy as jnp
import numpy as np
from jax import lax
from jax.experimental import pallas as pl
from jax.experimental.pallas import tpu as pltpu

CHANNELS = (8, 16, 32, 64)   # mini-resnet18 stage widths
LATENT = 16                  # latent_dim
PROJ_HIDDEN = 32             # proj_hidden_dim
PRED_HIDDEN = 8              # pred_hidden_dim
BN_EPS = 1e-5

_VMEM = pl.BlockSpec(memory_space=pltpu.MemorySpace.VMEM)


# ---------------------------------------------------------------------------
# numpy constant builders (baked once in prepare_params, exact 0/1 matrices)
# ---------------------------------------------------------------------------
def _np_rowpad(h, pad):
    """(h+2*pad, h) matrix: M @ x zero-pads x's rows top/bottom."""
    m = np.zeros((h + 2 * pad, h), np.float32)
    m[pad:pad + h, :] = np.eye(h, dtype=np.float32)
    return m


def _np_rowsel(ho, stride):
    """(ho, (ho-1)*stride+1) matrix selecting every stride-th dense row."""
    hd = (ho - 1) * stride + 1
    m = np.zeros((ho, hd), np.float32)
    m[np.arange(ho), np.arange(ho) * stride] = 1.0
    return m


def _np_bn_sel(n, wo, c):
    """(n*wo*c, c) per-channel column-grouping matrix (its transpose broadcasts
    per-channel scalars back to every (image, x) column position)."""
    return np.kron(np.ones((n * wo, 1), np.float32), np.eye(c, dtype=np.float32))


def _np_avg_sel(n, wo, c):
    """(n*wo*c, n*c) per-image per-channel column-sum matrix (global avgpool)."""
    return np.kron(np.eye(n, dtype=np.float32),
                   np.kron(np.ones((wo, 1), np.float32), np.eye(c, dtype=np.float32)))


def _fold_conv_w(w4, *, stride, pad, n, w_in):
    """Fold a (KH,KW,Cin,Cout) conv weight into KH banded matrices that act on
    the width-folded layout (rows = padded H, cols = n*w_in*Cin).  KW taps,
    width padding and width stride are baked into the band structure."""
    kh, kw, cin, cout = map(int, w4.shape)
    wo = (w_in + 2 * pad - kw) // stride + 1
    taps = []
    for di in range(kh):
        acc = jnp.zeros((n * w_in * cin, n * wo * cout), jnp.float32)
        for dj in range(kw):
            e = np.zeros((w_in, wo), np.float32)
            for x in range(wo):
                u = x * stride + dj - pad
                if 0 <= u < w_in:
                    e[u, x] = 1.0
            place = np.kron(np.eye(n, dtype=np.float32), e)       # (n*w_in, n*wo)
            acc = acc + jnp.kron(jnp.asarray(place), w4[di, dj])  # (n*w_in*cin, n*wo*cout)
        taps.append(acc)
    return jnp.stack(taps, axis=0).astype(jnp.bfloat16)


# ---------------------------------------------------------------------------
# in-kernel helpers (traced inside each Pallas kernel)
# ---------------------------------------------------------------------------
def _bn_cols(y, gb, s_dn, s_up, inv_cnt, relu):
    """Training-mode BatchNorm on a width-folded slab y (R, n*wo*C).
    Per-channel stats via the 0/1 selection matmuls s_dn/(s_up = s_dn.T)."""
    gamma = gb[0:1, :]
    beta = gb[1:2, :]
    mean_c = jnp.dot(jnp.sum(y, axis=0, keepdims=True), s_dn,
                     preferred_element_type=jnp.float32) * inv_cnt
    d = y - jnp.dot(mean_c, s_up, preferred_element_type=jnp.float32)
    var_c = jnp.dot(jnp.sum(d * d, axis=0, keepdims=True), s_dn,
                    preferred_element_type=jnp.float32) * inv_cnt
    scale_c = gamma * lax.rsqrt(var_c + BN_EPS)
    out = d * jnp.dot(scale_c, s_up, preferred_element_type=jnp.float32) \
        + jnp.dot(beta, s_up, preferred_element_type=jnp.float32)
    return jnp.maximum(out, 0.0) if relu else out


def _lin_bn(x, w, b, gb, *, relu):
    """Linear + training-mode BatchNorm1d (+ optional ReLU), all f32."""
    y = jnp.dot(x, w, preferred_element_type=jnp.float32) + b
    mean = jnp.mean(y, axis=0, keepdims=True)
    var = jnp.mean(jnp.square(y - mean), axis=0, keepdims=True)
    out = (y - mean) * (gb[0:1, :] * lax.rsqrt(var + BN_EPS)) + gb[1:2, :]
    return jnp.maximum(out, 0.0) if relu else out


# ---------------------------------------------------------------------------
# fused stem kernel: conv7x7/s2/p3 + BN + ReLU + maxpool3x3/s2/p1
# ---------------------------------------------------------------------------
def _make_stem_kernel(kh, hd, inv_cnt):
    def kernel(x_ref, w_ref, gb_ref, rp_ref, rs_ref, sdn_ref, sup_ref,
               mpr_ref, mpc_ref, o_ref):
        # row-pad the folded input (columns pre-folded; width pad is in w_ref)
        xp = jnp.dot(rp_ref[...], x_ref[...], preferred_element_type=jnp.float32)
        acc = jnp.dot(xp[0:hd, :].astype(jnp.bfloat16), w_ref[0],
                      preferred_element_type=jnp.float32)
        for di in range(1, kh):
            acc = acc + jnp.dot(xp[di:di + hd, :].astype(jnp.bfloat16), w_ref[di],
                                preferred_element_type=jnp.float32)
        y = jnp.dot(rs_ref[...], acc, preferred_element_type=jnp.float32)  # H stride 2
        y = _bn_cols(y, gb_ref[...], sdn_ref[...], sup_ref[...], inv_cnt, relu=True)
        # maxpool 3x3/s2/p1 via row/column selection matmuls (zero pad is exact
        # here since y is post-ReLU, i.e. >= 0).
        r = jnp.dot(mpr_ref[0], y, preferred_element_type=jnp.float32)
        for di in range(1, 3):
            r = jnp.maximum(r, jnp.dot(mpr_ref[di], y, preferred_element_type=jnp.float32))
        o = jnp.dot(r, mpc_ref[0], preferred_element_type=jnp.float32)
        for dj in range(1, 3):
            o = jnp.maximum(o, jnp.dot(r, mpc_ref[dj], preferred_element_type=jnp.float32))
        o_ref[...] = o
    return kernel


# ---------------------------------------------------------------------------
# fused BasicBlock kernel (+ optional downsample, + avgpool epilogue on last)
# ---------------------------------------------------------------------------
def _make_block_kernel(*, h_in, ho, hd1, use_rs, has_ds, is_last, inv_cnt, inv_pool):
    tiny1 = (h_in == 1)   # only the centre row-tap touches real data
    tiny2 = (ho == 1)

    def kernel(*refs):
        it = iter(refs)
        x_ref = next(it)
        w1_ref = next(it)
        w2_ref = next(it)
        wd_ref = next(it) if has_ds else None
        gb1 = next(it)[...]
        gb2 = next(it)[...]
        gbd = next(it)[...] if has_ds else None
        rp1 = next(it)[...] if not tiny1 else None
        rp2 = next(it)[...] if not tiny2 else None
        rs = next(it)[...] if use_rs else None
        sdn = next(it)[...]
        sup = next(it)[...]
        sav = next(it)[...] if is_last else None
        o_ref = next(it)

        x = x_ref[...]

        # conv1 (3x3, stride s, pad 1) + BN + ReLU
        if tiny1:
            acc = jnp.dot(x.astype(jnp.bfloat16), w1_ref[1],
                          preferred_element_type=jnp.float32)
        else:
            xp = jnp.dot(rp1, x, preferred_element_type=jnp.float32)
            acc = jnp.dot(xp[0:hd1, :].astype(jnp.bfloat16), w1_ref[0],
                          preferred_element_type=jnp.float32)
            for di in range(1, 3):
                acc = acc + jnp.dot(xp[di:di + hd1, :].astype(jnp.bfloat16), w1_ref[di],
                                    preferred_element_type=jnp.float32)
            if use_rs:
                acc = jnp.dot(rs, acc, preferred_element_type=jnp.float32)
        h1 = _bn_cols(acc, gb1, sdn, sup, inv_cnt, relu=True)

        # conv2 (3x3, stride 1, pad 1) + BN
        if tiny2:
            acc2 = jnp.dot(h1.astype(jnp.bfloat16), w2_ref[1],
                           preferred_element_type=jnp.float32)
        else:
            h1p = jnp.dot(rp2, h1, preferred_element_type=jnp.float32)
            acc2 = jnp.dot(h1p[0:ho, :].astype(jnp.bfloat16), w2_ref[0],
                           preferred_element_type=jnp.float32)
            for di in range(1, 3):
                acc2 = acc2 + jnp.dot(h1p[di:di + ho, :].astype(jnp.bfloat16), w2_ref[di],
                                      preferred_element_type=jnp.float32)
        y2 = _bn_cols(acc2, gb2, sdn, sup, inv_cnt, relu=False)

        # identity path (optional 1x1/s2 downsample conv + BN)
        if has_ds:
            accd = jnp.dot(x[0:hd1, :].astype(jnp.bfloat16), wd_ref[...],
                           preferred_element_type=jnp.float32)
            if use_rs:
                accd = jnp.dot(rs, accd, preferred_element_type=jnp.float32)
            ident = _bn_cols(accd, gbd, sdn, sup, inv_cnt, relu=False)
        else:
            ident = x

        out = jnp.maximum(y2 + ident, 0.0)

        if is_last:  # fused AdaptiveAvgPool2d((1,1)) epilogue -> (1, N*C)
            pooled = jnp.dot(jnp.sum(out, axis=0, keepdims=True), sav,
                             preferred_element_type=jnp.float32) * inv_pool
            o_ref[...] = pooled
        else:
            o_ref[...] = out

    return kernel


# ---------------------------------------------------------------------------
# fused MLP head kernels
# ---------------------------------------------------------------------------
def _proj_kernel(e_ref, w1, b1, gb1, w2, b2, gb2, w3, b3, gb3, o_ref):
    h = _lin_bn(e_ref[...], w1[...], b1[...], gb1[...], relu=True)
    h = _lin_bn(h, w2[...], b2[...], gb2[...], relu=True)
    o_ref[...] = _lin_bn(h, w3[...], b3[...], gb3[...], relu=False)


def _pred_kernel(z_ref, w1, b1, gb1, w2, b2, o_ref):
    h = _lin_bn(z_ref[...], w1[...], b1[...], gb1[...], relu=True)
    o_ref[...] = jnp.dot(h, w2[...], preferred_element_type=jnp.float32) + b2[...]


# ---------------------------------------------------------------------------
# parameter init (deterministic, synthetic; same layout as before)
# ---------------------------------------------------------------------------
def _conv_init(key, kh, kw, cin, cout):
    fan_in = kh * kw * cin
    return jax.random.normal(key, (kh, kw, cin, cout), jnp.float32) * (2.0 / fan_in) ** 0.5


def _bn_init(c):
    return {"gamma": jnp.ones((c,), jnp.float32), "beta": jnp.zeros((c,), jnp.float32)}


def _linear_init(key, cin, cout):
    k1, k2 = jax.random.split(key)
    bound = 1.0 / (cin ** 0.5)
    return {"w": jax.random.uniform(k1, (cin, cout), jnp.float32, -bound, bound),
            "b": jax.random.uniform(k2, (cout,), jnp.float32, -bound, bound)}


def _block_init(key, cin, cout, stride):
    ks = jax.random.split(key, 3)
    p = {"conv1": {"w": _conv_init(ks[0], 3, 3, cin, cout), **_bn_init(cout)},
         "conv2": {"w": _conv_init(ks[1], 3, 3, cout, cout), **_bn_init(cout)}}
    if stride != 1 or cin != cout:
        p["down"] = {"w": _conv_init(ks[2], 1, 1, cin, cout), **_bn_init(cout)}
    return p


def init_params(key):
    keys = jax.random.split(key, 16)
    params = {"stem": {"w": _conv_init(keys[0], 7, 7, 3, CHANNELS[0]),
                       **_bn_init(CHANNELS[0])}}
    stages, cin, ki = [], CHANNELS[0], 1
    for si, cout in enumerate(CHANNELS):
        stride = 1 if si == 0 else 2
        blocks = []
        for bi in range(2):
            blocks.append(_block_init(keys[ki], cin if bi == 0 else cout, cout,
                                      stride if bi == 0 else 1))
            ki += 1
        stages.append({"stride": stride, "blocks": blocks})
        cin = cout
    params["stages"] = stages
    emb = CHANNELS[-1]
    params["proj"] = {
        "fc1": _linear_init(keys[ki], emb, PROJ_HIDDEN), "bn1": _bn_init(PROJ_HIDDEN),
        "fc2": _linear_init(keys[ki + 1], PROJ_HIDDEN, PROJ_HIDDEN), "bn2": _bn_init(PROJ_HIDDEN),
        "fc3": _linear_init(keys[ki + 2], PROJ_HIDDEN, LATENT), "bn3": _bn_init(LATENT),
    }
    params["pred"] = {
        "fc1": _linear_init(keys[ki + 3], LATENT, PRED_HIDDEN), "bn1": _bn_init(PRED_HIDDEN),
        "fc2": _linear_init(keys[ki + 4], PRED_HIDDEN, LATENT),
    }
    return params


# ---------------------------------------------------------------------------
# prepare raw params -> kernel-ready constants (run once, outside the hot path)
# ---------------------------------------------------------------------------
def _prepare_stem(stem, *, n, h_in, w_in):
    kh, kw, cin, cout = map(int, stem["w"].shape)
    stride, pad = 2, 3
    ho = (h_in + 2 * pad - kh) // stride + 1          # 16
    wo = (w_in + 2 * pad - kw) // stride + 1          # 16
    hd = (ho - 1) * stride + 1                        # 31
    po_h = (ho + 2 - 3) // 2 + 1                      # maxpool out H = 8
    po_w = (wo + 2 - 3) // 2 + 1                      # maxpool out W = 8

    mprow = np.zeros((3, po_h, ho), np.float32)
    for di in range(3):
        for y in range(po_h):
            r = 2 * y + di - 1
            if 0 <= r < ho:
                mprow[di, y, r] = 1.0
    mpcol = []
    for dj in range(3):
        inner = np.zeros((wo, po_w), np.float32)
        for x in range(po_w):
            u = 2 * x + dj - 1
            if 0 <= u < wo:
                inner[u, x] = 1.0
        mpcol.append(np.kron(np.kron(np.eye(n, dtype=np.float32), inner),
                             np.eye(cout, dtype=np.float32)))
    mpcol = np.stack(mpcol, axis=0)

    args = (
        _fold_conv_w(stem["w"], stride=stride, pad=pad, n=n, w_in=w_in),
        jnp.stack([stem["gamma"], stem["beta"]]),
        jnp.asarray(_np_rowpad(h_in, pad)),
        jnp.asarray(_np_rowsel(ho, stride)),
        jnp.asarray(_np_bn_sel(n, wo, cout)),
        jnp.asarray(_np_bn_sel(n, wo, cout).T.copy()),
        jnp.asarray(mprow),
        jnp.asarray(mpcol),
    )
    cfg = dict(kh=kh, hd=hd, inv_cnt=1.0 / float(n * ho * wo),
               out_shape=(po_h, n * po_w * cout))
    return {"args": args, "cfg": cfg}, po_h, po_w


def _prepare_block(blk, *, n, h_in, w_in, stride, is_last):
    kh, kw, cin, cout = map(int, blk["conv1"]["w"].shape)
    ho = (h_in + 2 - kh) // stride + 1
    wo = (w_in + 2 - kw) // stride + 1
    hd1 = (ho - 1) * stride + 1
    has_ds = "down" in blk
    use_rs = hd1 > ho
    sdn = _np_bn_sel(n, wo, cout)

    args = [
        _fold_conv_w(blk["conv1"]["w"], stride=stride, pad=1, n=n, w_in=w_in),
        _fold_conv_w(blk["conv2"]["w"], stride=1, pad=1, n=n, w_in=wo),
    ]
    if has_ds:
        args.append(_fold_conv_w(blk["down"]["w"], stride=stride, pad=0, n=n, w_in=w_in)[0])
    args += [jnp.stack([blk["conv1"]["gamma"], blk["conv1"]["beta"]]),
             jnp.stack([blk["conv2"]["gamma"], blk["conv2"]["beta"]])]
    if has_ds:
        args.append(jnp.stack([blk["down"]["gamma"], blk["down"]["beta"]]))
    if h_in > 1:
        args.append(jnp.asarray(_np_rowpad(h_in, 1)))
    if ho > 1:
        args.append(jnp.asarray(_np_rowpad(ho, 1)))
    if use_rs:
        args.append(jnp.asarray(_np_rowsel(ho, stride)))
    args += [jnp.asarray(sdn), jnp.asarray(sdn.T.copy())]
    if is_last:
        args.append(jnp.asarray(_np_avg_sel(n, wo, cout)))

    cfg = dict(h_in=h_in, ho=ho, hd1=hd1, use_rs=use_rs, has_ds=has_ds, is_last=is_last,
               inv_cnt=1.0 / float(n * ho * wo), inv_pool=1.0 / float(ho * wo),
               out_shape=((1, n * cout) if is_last else (ho, n * wo * cout)))
    return {"args": tuple(args), "cfg": cfg}, ho, wo


def prepare_params(params, *, n=2, h=32, w=32):
    kp = {}
    kp["stem"], h_cur, w_cur = _prepare_stem(params["stem"], n=n, h_in=h, w_in=w)
    blocks = []
    n_stages = len(params["stages"])
    for si, stage in enumerate(params["stages"]):
        for bi, blk in enumerate(stage["blocks"]):
            stride = stage["stride"] if bi == 0 else 1
            is_last = (si == n_stages - 1) and (bi == len(stage["blocks"]) - 1)
            bkp, h_cur, w_cur = _prepare_block(blk, n=n, h_in=h_cur, w_in=w_cur,
                                               stride=stride, is_last=is_last)
            blocks.append(bkp)
    kp["blocks"] = blocks

    pj = params["proj"]
    kp["proj"] = (pj["fc1"]["w"], pj["fc1"]["b"].reshape(1, -1),
                  jnp.stack([pj["bn1"]["gamma"], pj["bn1"]["beta"]]),
                  pj["fc2"]["w"], pj["fc2"]["b"].reshape(1, -1),
                  jnp.stack([pj["bn2"]["gamma"], pj["bn2"]["beta"]]),
                  pj["fc3"]["w"], pj["fc3"]["b"].reshape(1, -1),
                  jnp.stack([pj["bn3"]["gamma"], pj["bn3"]["beta"]]))
    pd = params["pred"]
    kp["pred"] = (pd["fc1"]["w"], pd["fc1"]["b"].reshape(1, -1),
                  jnp.stack([pd["bn1"]["gamma"], pd["bn1"]["beta"]]),
                  pd["fc2"]["w"], pd["fc2"]["b"].reshape(1, -1))
    return kp


# ---------------------------------------------------------------------------
# pallas_call wrappers
# ---------------------------------------------------------------------------
def _run_stem(kp, x2d):
    cfg = kp["cfg"]
    kernel = _make_stem_kernel(cfg["kh"], cfg["hd"], cfg["inv_cnt"])
    args = (x2d,) + kp["args"]
    return pl.pallas_call(
        kernel,
        out_shape=jax.ShapeDtypeStruct(cfg["out_shape"], jnp.float32),
        in_specs=[_VMEM] * len(args),
        out_specs=_VMEM,
    )(*args)


def _run_block(kp, x2d):
    cfg = kp["cfg"]
    kernel = _make_block_kernel(
        h_in=cfg["h_in"], ho=cfg["ho"], hd1=cfg["hd1"], use_rs=cfg["use_rs"],
        has_ds=cfg["has_ds"], is_last=cfg["is_last"],
        inv_cnt=cfg["inv_cnt"], inv_pool=cfg["inv_pool"])
    args = (x2d,) + kp["args"]
    return pl.pallas_call(
        kernel,
        out_shape=jax.ShapeDtypeStruct(cfg["out_shape"], jnp.float32),
        in_specs=[_VMEM] * len(args),
        out_specs=_VMEM,
    )(*args)


# ---------------------------------------------------------------------------
# SimSiam forward / project / predict
# ---------------------------------------------------------------------------
def encode(kparams, x_nchw):
    n, c, h, w = x_nchw.shape
    # NCHW -> width-folded 2-D layout (H, N*W*C); pure layout plumbing at the
    # boundary (contiguous transpose+reshape of a tiny input).
    x2d = jnp.transpose(x_nchw, (2, 0, 3, 1)).reshape(h, n * w * c).astype(jnp.float32)
    x2d = _run_stem(kparams["stem"], x2d)          # (8, N*8*8)
    for bkp in kparams["blocks"]:
        x2d = _run_block(bkp, x2d)                 # -> (1, N*64) after last block
    feats = x2d.reshape(n, CHANNELS[-1])           # avgpool output, (N, emb_dim)
    return jnp.squeeze(feats)                      # matches Encoder.forward(...).squeeze()


def simsiam_forward(kparams, x_nchw):              # SimSiam.forward == encode
    return encode(kparams, x_nchw)


def project(kparams, e):
    args = (e,) + kparams["proj"]
    return pl.pallas_call(
        _proj_kernel,
        out_shape=jax.ShapeDtypeStruct((e.shape[0], LATENT), jnp.float32),
        in_specs=[_VMEM] * len(args),
        out_specs=_VMEM,
    )(*args)


def predict(kparams, z):
    args = (z,) + kparams["pred"]
    return pl.pallas_call(
        _pred_kernel,
        out_shape=jax.ShapeDtypeStruct((z.shape[0], LATENT), jnp.float32),
        in_specs=[_VMEM] * len(args),
        out_specs=_VMEM,
    )(*args)


# ---------------------------------------------------------------------------
if __name__ == "__main__":
    key = jax.random.PRNGKey(0)
    k_param, k_x = jax.random.split(key)
    params = init_params(k_param)
    kparams = prepare_params(params, n=2, h=32, w=32)   # one-time weight folding

    x = jax.random.normal(k_x, (2, 3, 32, 32), jnp.float32)  # NCHW, like PyTorch

    e = simsiam_forward(kparams, x)   # == encode(x) -> (2, 64)
    z = project(kparams, e)           # (2, 16)
    p = predict(kparams, z)           # (2, 16)

    jax.block_until_ready((e, z, p))
    assert e.shape == (2, CHANNELS[-1]) and z.shape == (2, LATENT) and p.shape == (2, LATENT)
    assert bool(jnp.all(jnp.isfinite(e))) and bool(jnp.all(jnp.isfinite(z))) and bool(jnp.all(jnp.isfinite(p)))
    print("KERNEL_OK")
</pallas_src>

<mosaic_0001>
module attributes {stable_mosaic.version = 11 : i64} {
  func.func @kernel(%arg0: memref<32x192xf32, #tpu.memory_space<vmem>>, %arg1: memref<7x192x256xbf16, #tpu.memory_space<vmem>>, %arg2: memref<2x8xf32, #tpu.memory_space<vmem>>, %arg3: memref<38x32xf32, #tpu.memory_space<vmem>>, %arg4: memref<16x31xf32, #tpu.memory_space<vmem>>, %arg5: memref<256x8xf32, #tpu.memory_space<vmem>>, %arg6: memref<8x256xf32, #tpu.memory_space<vmem>>, %arg7: memref<3x8x16xf32, #tpu.memory_space<vmem>>, %arg8: memref<3x256x128xf32, #tpu.memory_space<vmem>>, %arg9: memref<8x128xf32, #tpu.memory_space<vmem>>) attributes {dimension_semantics = [], scalar_prefetch = 0 : i64, scratch_operands = 0 : i64, tpu.core_type = #tpu.core_type<tc>} {
    %c0 = arith.constant 0 : index
    %c0_0 = arith.constant 0 : index
    %0 = vector.load %arg3[%c0, %c0_0] : memref<38x32xf32, #tpu.memory_space<vmem>>, vector<38x32xf32>
    %c0_1 = arith.constant 0 : index
    %c0_2 = arith.constant 0 : index
    %1 = vector.load %arg0[%c0_1, %c0_2] : memref<32x192xf32, #tpu.memory_space<vmem>>, vector<32x192xf32>
    %cst = arith.constant dense<0.000000e+00> : vector<38x192xf32>
    %2 = tpu.matmul %0, %1, %cst {dimension_numbers = #tpu.dot_dimension_numbers<[1], [0], [0], [1], [0, 0, 1, 1], [], []>} : vector<38x32xf32>, vector<32x192xf32>, vector<38x192xf32> -> vector<38x192xf32>
    %3 = vector.extract_strided_slice %2 {offsets = [0, 0], sizes = [31, 192], strides = [1, 1]} : vector<38x192xf32> to vector<31x192xf32>
    %4 = arith.truncf %3 : vector<31x192xf32> to vector<31x192xbf16>
    %c0_3 = arith.constant 0 : index
    %c0_4 = arith.constant 0 : index
    %c0_5 = arith.constant 0 : index
    %5 = vector.load %arg1[%c0_3, %c0_4, %c0_5] : memref<7x192x256xbf16, #tpu.memory_space<vmem>>, vector<1x192x256xbf16>
    %6 = vector.shape_cast %5 : vector<1x192x256xbf16> to vector<192x256xbf16>
    %cst_6 = arith.constant dense<0.000000e+00> : vector<31x256xf32>
    %7 = tpu.matmul %4, %6, %cst_6 {dimension_numbers = #tpu.dot_dimension_numbers<[1], [0], [0], [1], [0, 0, 1, 1], [], []>} : vector<31x192xbf16>, vector<192x256xbf16>, vector<31x256xf32> -> vector<31x256xf32>
    %8 = vector.extract_strided_slice %2 {offsets = [1, 0], sizes = [31, 192], strides = [1, 1]} : vector<38x192xf32> to vector<31x192xf32>
    %9 = arith.truncf %8 : vector<31x192xf32> to vector<31x192xbf16>
    %c1 = arith.constant 1 : index
    %c0_7 = arith.constant 0 : index
    %c0_8 = arith.constant 0 : index
    %10 = vector.load %arg1[%c1, %c0_7, %c0_8] : memref<7x192x256xbf16, #tpu.memory_space<vmem>>, vector<1x192x256xbf16>
    %11 = vector.shape_cast %10 : vector<1x192x256xbf16> to vector<192x256xbf16>
    %cst_9 = arith.constant dense<0.000000e+00> : vector<31x256xf32>
    %12 = tpu.matmul %9, %11, %cst_9 {dimension_numbers = #tpu.dot_dimension_numbers<[1], [0], [0], [1], [0, 0, 1, 1], [], []>} : vector<31x192xbf16>, vector<192x256xbf16>, vector<31x256xf32> -> vector<31x256xf32>
    %13 = arith.addf %7, %12 : vector<31x256xf32>
    %14 = vector.extract_strided_slice %2 {offsets = [2, 0], sizes = [31, 192], strides = [1, 1]} : vector<38x192xf32> to vector<31x192xf32>
    %15 = arith.truncf %14 : vector<31x192xf32> to vector<31x192xbf16>
    %c2 = arith.constant 2 : index
    %c0_10 = arith.constant 0 : index
    %c0_11 = arith.constant 0 : index
    %16 = vector.load %arg1[%c2, %c0_10, %c0_11] : memref<7x192x256xbf16, #tpu.memory_space<vmem>>, vector<1x192x256xbf16>
    %17 = vector.shape_cast %16 : vector<1x192x256xbf16> to vector<192x256xbf16>
    %cst_12 = arith.constant dense<0.000000e+00> : vector<31x256xf32>
    %18 = tpu.matmul %15, %17, %cst_12 {dimension_numbers = #tpu.dot_dimension_numbers<[1], [0], [0], [1], [0, 0, 1, 1], [], []>} : vector<31x192xbf16>, vector<192x256xbf16>, vector<31x256xf32> -> vector<31x256xf32>
    %19 = arith.addf %13, %18 : vector<31x256xf32>
    %20 = vector.extract_strided_slice %2 {offsets = [3, 0], sizes = [31, 192], strides = [1, 1]} : vector<38x192xf32> to vector<31x192xf32>
    %21 = arith.truncf %20 : vector<31x192xf32> to vector<31x192xbf16>
    %c3 = arith.constant 3 : index
    %c0_13 = arith.constant 0 : index
    %c0_14 = arith.constant 0 : index
    %22 = vector.load %arg1[%c3, %c0_13, %c0_14] : memref<7x192x256xbf16, #tpu.memory_space<vmem>>, vector<1x192x256xbf16>
    %23 = vector.shape_cast %22 : vector<1x192x256xbf16> to vector<192x256xbf16>
    %cst_15 = arith.constant dense<0.000000e+00> : vector<31x256xf32>
    %24 = tpu.matmul %21, %23, %cst_15 {dimension_numbers = #tpu.dot_dimension_numbers<[1], [0], [0], [1], [0, 0, 1, 1], [], []>} : vector<31x192xbf16>, vector<192x256xbf16>, vector<31x256xf32> -> vector<31x256xf32>
    %25 = arith.addf %19, %24 : vector<31x256xf32>
    %26 = vector.extract_strided_slice %2 {offsets = [4, 0], sizes = [31, 192], strides = [1, 1]} : vector<38x192xf32> to vector<31x192xf32>
    %27 = arith.truncf %26 : vector<31x192xf32> to vector<31x192xbf16>
    %c4 = arith.constant 4 : index
    %c0_16 = arith.constant 0 : index
    %c0_17 = arith.constant 0 : index
    %28 = vector.load %arg1[%c4, %c0_16, %c0_17] : memref<7x192x256xbf16, #tpu.memory_space<vmem>>, vector<1x192x256xbf16>
    %29 = vector.shape_cast %28 : vector<1x192x256xbf16> to vector<192x256xbf16>
    %cst_18 = arith.constant dense<0.000000e+00> : vector<31x256xf32>
    %30 = tpu.matmul %27, %29, %cst_18 {dimension_numbers = #tpu.dot_dimension_numbers<[1], [0], [0], [1], [0, 0, 1, 1], [], []>} : vector<31x192xbf16>, vector<192x256xbf16>, vector<31x256xf32> -> vector<31x256xf32>
    %31 = arith.addf %25, %30 : vector<31x256xf32>
    %32 = vector.extract_strided_slice %2 {offsets = [5, 0], sizes = [31, 192], strides = [1, 1]} : vector<38x192xf32> to vector<31x192xf32>
    %33 = arith.truncf %32 : vector<31x192xf32> to vector<31x192xbf16>
    %c5 = arith.constant 5 : index
    %c0_19 = arith.constant 0 : index
    %c0_20 = arith.constant 0 : index
    %34 = vector.load %arg1[%c5, %c0_19, %c0_20] : memref<7x192x256xbf16, #tpu.memory_space<vmem>>, vector<1x192x256xbf16>
    %35 = vector.shape_cast %34 : vector<1x192x256xbf16> to vector<192x256xbf16>
    %cst_21 = arith.constant dense<0.000000e+00> : vector<31x256xf32>
    %36 = tpu.matmul %33, %35, %cst_21 {dimension_numbers = #tpu.dot_dimension_numbers<[1], [0], [0], [1], [0, 0, 1, 1], [], []>} : vector<31x192xbf16>, vector<192x256xbf16>, vector<31x256xf32> -> vector<31x256xf32>
    %37 = arith.addf %31, %36 : vector<31x256xf32>
    %38 = vector.extract_strided_slice %2 {offsets = [6, 0], sizes = [31, 192], strides = [1, 1]} : vector<38x192xf32> to vector<31x192xf32>
    %39 = arith.truncf %38 : vector<31x192xf32> to vector<31x192xbf16>
    %c6 = arith.constant 6 : index
    %c0_22 = arith.constant 0 : index
    %c0_23 = arith.constant 0 : index
    %40 = vector.load %arg1[%c6, %c0_22, %c0_23] : memref<7x192x256xbf16, #tpu.memory_space<vmem>>, vector<1x192x256xbf16>
    %41 = vector.shape_cast %40 : vector<1x192x256xbf16> to vector<192x256xbf16>
    %cst_24 = arith.constant dense<0.000000e+00> : vector<31x256xf32>
    %42 = tpu.matmul %39, %41, %cst_24 {dimension_numbers = #tpu.dot_dimension_numbers<[1], [0], [0], [1], [0, 0, 1, 1], [], []>} : vector<31x192xbf16>, vector<192x256xbf16>, vector<31x256xf32> -> vector<31x256xf32>
    %43 = arith.addf %37, %42 : vector<31x256xf32>
    %c0_25 = arith.constant 0 : index
    %c0_26 = arith.constant 0 : index
    %44 = vector.load %arg4[%c0_25, %c0_26] : memref<16x31xf32, #tpu.memory_space<vmem>>, vector<16x31xf32>
    %cst_27 = arith.constant dense<0.000000e+00> : vector<16x256xf32>
    %45 = tpu.matmul %44, %43, %cst_27 {dimension_numbers = #tpu.dot_dimension_numbers<[1], [0], [0], [1], [0, 0, 1, 1], [], []>} : vector<16x31xf32>, vector<31x256xf32>, vector<16x256xf32> -> vector<16x256xf32>
    %c0_28 = arith.constant 0 : index
    %c0_29 = arith.constant 0 : index
    %46 = vector.load %arg2[%c0_28, %c0_29] : memref<2x8xf32, #tpu.memory_space<vmem>>, vector<2x8xf32>
    %c0_30 = arith.constant 0 : index
    %c0_31 = arith.constant 0 : index
    %47 = vector.load %arg5[%c0_30, %c0_31] : memref<256x8xf32, #tpu.memory_space<vmem>>, vector<256x8xf32>
    %c0_32 = arith.constant 0 : index
    %c0_33 = arith.constant 0 : index
    %48 = vector.load %arg6[%c0_32, %c0_33] : memref<8x256xf32, #tpu.memory_space<vmem>>, vector<8x256xf32>
    %49 = vector.extract_strided_slice %46 {offsets = [0, 0], sizes = [1, 8], strides = [1, 1]} : vector<2x8xf32> to vector<1x8xf32>
    %50 = vector.extract_strided_slice %46 {offsets = [1, 0], sizes = [1, 8], strides = [1, 1]} : vector<2x8xf32> to vector<1x8xf32>
    %cst_34 = arith.constant dense<0.000000e+00> : vector<256xf32>
    %51 = vector.multi_reduction <add>, %45, %cst_34 [0] : vector<16x256xf32> to vector<256xf32>
    %52 = vector.shape_cast %51 : vector<256xf32> to vector<1x256xf32>
    %cst_35 = arith.constant dense<0.000000e+00> : vector<1x8xf32>
    %53 = tpu.matmul %52, %47, %cst_35 {dimension_numbers = #tpu.dot_dimension_numbers<[1], [0], [0], [1], [0, 0, 1, 1], [], []>} : vector<1x256xf32>, vector<256x8xf32>, vector<1x8xf32> -> vector<1x8xf32>
    %cst_36 = arith.constant 0.001953125 : f32
    %54 = vector.broadcast %cst_36 : f32 to vector<1x8xf32>
    %55 = arith.mulf %53, %54 : vector<1x8xf32>
    %cst_37 = arith.constant dense<0.000000e+00> : vector<1x256xf32>
    %56 = tpu.matmul %55, %48, %cst_37 {dimension_numbers = #tpu.dot_dimension_numbers<[1], [0], [0], [1], [0, 0, 1, 1], [], []>} : vector<1x8xf32>, vector<8x256xf32>, vector<1x256xf32> -> vector<1x256xf32>
    %57 = vector.broadcast %56 : vector<1x256xf32> to vector<16x256xf32>
    %58 = arith.subf %45, %57 : vector<16x256xf32>
    %59 = arith.mulf %58, %58 : vector<16x256xf32>
    %cst_38 = arith.constant dense<0.000000e+00> : vector<256xf32>
    %60 = vector.multi_reduction <add>, %59, %cst_38 [0] : vector<16x256xf32> to vector<256xf32>
    %61 = vector.shape_cast %60 : vector<256xf32> to vector<1x256xf32>
    %cst_39 = arith.constant dense<0.000000e+00> : vector<1x8xf32>
    %62 = tpu.matmul %61, %47, %cst_39 {dimension_numbers = #tpu.dot_dimension_numbers<[1], [0], [0], [1], [0, 0, 1, 1], [], []>} : vector<1x256xf32>, vector<256x8xf32>, vector<1x8xf32> -> vector<1x8xf32>
    %cst_40 = arith.constant 0.001953125 : f32
    %63 = vector.broadcast %cst_40 : f32 to vector<1x8xf32>
    %64 = arith.mulf %62, %63 : vector<1x8xf32>
    %cst_41 = arith.constant 9.99999974E-6 : f32
    %65 = vector.broadcast %cst_41 : f32 to vector<1x8xf32>
    %66 = arith.addf %64, %65 : vector<1x8xf32>
    %67 = math.rsqrt %66 : vector<1x8xf32>
    %68 = arith.mulf %49, %67 : vector<1x8xf32>
    %cst_42 = arith.constant dense<0.000000e+00> : vector<1x256xf32>
    %69 = tpu.matmul %68, %48, %cst_42 {dimension_numbers = #tpu.dot_dimension_numbers<[1], [0], [0], [1], [0, 0, 1, 1], [], []>} : vector<1x8xf32>, vector<8x256xf32>, vector<1x256xf32> -> vector<1x256xf32>
    %70 = vector.broadcast %69 : vector<1x256xf32> to vector<16x256xf32>
    %71 = arith.mulf %58, %70 : vector<16x256xf32>
    %cst_43 = arith.constant dense<0.000000e+00> : vector<1x256xf32>
    %72 = tpu.matmul %50, %48, %cst_43 {dimension_numbers = #tpu.dot_dimension_numbers<[1], [0], [0], [1], [0, 0, 1, 1], [], []>} : vector<1x8xf32>, vector<8x256xf32>, vector<1x256xf32> -> vector<1x256xf32>
    %73 = vector.broadcast %72 : vector<1x256xf32> to vector<16x256xf32>
    %74 = arith.addf %71, %73 : vector<16x256xf32>
    %cst_44 = arith.constant 0.000000e+00 : f32
    %75 = vector.broadcast %cst_44 : f32 to vector<16x256xf32>
    %76 = arith.maximumf %74, %75 : vector<16x256xf32>
    %c0_45 = arith.constant 0 : index
    %c0_46 = arith.constant 0 : index
    %c0_47 = arith.constant 0 : index
    %77 = vector.load %arg7[%c0_45, %c0_46, %c0_47] : memref<3x8x16xf32, #tpu.memory_space<vmem>>, vector<1x8x16xf32>
    %78 = vector.shape_cast %77 : vector<1x8x16xf32> to vector<8x16xf32>
    %cst_48 = arith.constant dense<0.000000e+00> : vector<8x256xf32>
    %79 = tpu.matmul %78, %76, %cst_48 {dimension_numbers = #tpu.dot_dimension_numbers<[1], [0], [0], [1], [0, 0, 1, 1], [], []>} : vector<8x16xf32>, vector<16x256xf32>, vector<8x256xf32> -> vector<8x256xf32>
    %c1_49 = arith.constant 1 : index
    %c0_50 = arith.constant 0 : index
    %c0_51 = arith.constant 0 : index
    %80 = vector.load %arg7[%c1_49, %c0_50, %c0_51] : memref<3x8x16xf32, #tpu.memory_space<vmem>>, vector<1x8x16xf32>
    %81 = vector.shape_cast %80 : vector<1x8x16xf32> to vector<8x16xf32>
    %cst_52 = arith.constant dense<0.000000e+00> : vector<8x256xf32>
    %82 = tpu.matmul %81, %76, %cst_52 {dimension_numbers = #tpu.dot_dimension_numbers<[1], [0], [0], [1], [0, 0, 1, 1], [], []>} : vector<8x16xf32>, vector<16x256xf32>, vector<8x256xf32> -> vector<8x256xf32>
    %83 = arith.maximumf %79, %82 : vector<8x256xf32>
    %c2_53 = arith.constant 2 : index
    %c0_54 = arith.constant 0 : index
    %c0_55 = arith.constant 0 : index
    %84 = vector.load %arg7[%c2_53, %c0_54, %c0_55] : memref<3x8x16xf32, #tpu.memory_space<vmem>>, vector<1x8x16xf32>
    %85 = vector.shape_cast %84 : vector<1x8x16xf32> to vector<8x16xf32>
    %cst_56 = arith.constant dense<0.000000e+00> : vector<8x256xf32>
    %86 = tpu.matmul %85, %76, %cst_56 {dimension_numbers = #tpu.dot_dimension_numbers<[1], [0], [0], [1], [0, 0, 1, 1], [], []>} : vector<8x16xf32>, vector<16x256xf32>, vector<8x256xf32> -> vector<8x256xf32>
    %87 = arith.maximumf %83, %86 : vector<8x256xf32>
    %c0_57 = arith.constant 0 : index
    %c0_58 = arith.constant 0 : index
    %c0_59 = arith.constant 0 : index
    %88 = vector.load %arg8[%c0_57, %c0_58, %c0_59] : memref<3x256x128xf32, #tpu.memory_space<vmem>>, vector<1x256x128xf32>
    %89 = vector.shape_cast %88 : vector<1x256x128xf32> to vector<256x128xf32>
    %cst_60 = arith.constant dense<0.000000e+00> : vector<8x128xf32>
    %90 = tpu.matmul %87, %89, %cst_60 {dimension_numbers = #tpu.dot_dimension_numbers<[1], [0], [0], [1], [0, 0, 1, 1], [], []>} : vector<8x256xf32>, vector<256x128xf32>, vector<8x128xf32> -> vector<8x128xf32>
    %c1_61 = arith.constant 1 : index
    %c0_62 = arith.constant 0 : index
    %c0_63 = arith.constant 0 : index
    %91 = vector.load %arg8[%c1_61, %c0_62, %c0_63] : memref<3x256x128xf32, #tpu.memory_space<vmem>>, vector<1x256x128xf32>
    %92 = vector.shape_cast %91 : vector<1x256x128xf32> to vector<256x128xf32>
    %cst_64 = arith.constant dense<0.000000e+00> : vector<8x128xf32>
    %93 = tpu.matmul %87, %92, %cst_64 {dimension_numbers = #tpu.dot_dimension_numbers<[1], [0], [0], [1], [0, 0, 1, 1], [], []>} : vector<8x256xf32>, vector<256x128xf32>, vector<8x128xf32> -> vector<8x128xf32>
    %94 = arith.maximumf %90, %93 : vector<8x128xf32>
    %c2_65 = arith.constant 2 : index
    %c0_66 = arith.constant 0 : index
    %c0_67 = arith.constant 0 : index
    %95 = vector.load %arg8[%c2_65, %c0_66, %c0_67] : memref<3x256x128xf32, #tpu.memory_space<vmem>>, vector<1x256x128xf32>
    %96 = vector.shape_cast %95 : vector<1x256x128xf32> to vector<256x128xf32>
    %cst_68 = arith.constant dense<0.000000e+00> : vector<8x128xf32>
    %97 = tpu.matmul %87, %96, %cst_68 {dimension_numbers = #tpu.dot_dimension_numbers<[1], [0], [0], [1], [0, 0, 1, 1], [], []>} : vector<8x256xf32>, vector<256x128xf32>, vector<8x128xf32> -> vector<8x128xf32>
    %98 = arith.maximumf %94, %97 : vector<8x128xf32>
    %c0_69 = arith.constant 0 : index
    %c0_70 = arith.constant 0 : index
    %99 = vector.load %arg9[%c0_69, %c0_70] : memref<8x128xf32, #tpu.memory_space<vmem>>, vector<8x128xf32>
    tpu.vector_store %arg9[%c0_69, %c0_70], %98 {strides = array<i32>} : memref<8x128xf32, #tpu.memory_space<vmem>>, vector<8x128xf32>,
    return
  }
}

</mosaic_0001>

<llo_original>
// kernel: tpu_custom_call.1
$region0: #{tpu_custom_call.1}
  #allocation0 [shape = 'u32[]', space=smem, size = 0x4, offset = 0x4, fixed_abs, tag = 'smem constant byte address 0x4 - core index']
  #allocation1 [shape = 'u32[72,128]{1,0:T(1,128)}', space=vmem, size = 0x9000, scoped, tag = 'internal scratch']
  %s0 = inlined_call_operand.vmem [shape: f32[32,192], index: 0, kind: input, shape index: {}]
  %s1 = inlined_call_operand.hbm [shape: bf16[7,192,256], index: 1, kind: input, shape index: {}]
  %s2 = inlined_call_operand.vmem [shape: f32[2,8], index: 2, kind: input, shape index: {}]
  %s3 = inlined_call_operand.vmem [shape: f32[38,32], index: 3, kind: input, shape index: {}]
  %s4 = inlined_call_operand.vmem [shape: f32[16,31], index: 4, kind: input, shape index: {}]
  %s5 = inlined_call_operand.vmem [shape: f32[256,8], index: 5, kind: input, shape index: {}]
  %s6 = inlined_call_operand.vmem [shape: f32[8,256], index: 6, kind: input, shape index: {}]
  %s7 = inlined_call_operand.vmem [shape: f32[3,8,16], index: 7, kind: input, shape index: {}]
  %s8 = inlined_call_operand.hbm [shape: f32[3,256,128], index: 8, kind: input, shape index: {}]
  %s9 = inlined_call_operand.hbm [shape: f32[8,128], index: 9, kind: output, shape index: {}]
  %s10 = sld [smem:[#allocation0]]
  $region54: #{tpu_custom_call.1} parent=0
    _
  %s12 = ssub.s32 1, %s10
  %s13 = scalar_select 0, %s12, %s10
  $region1: #{tpu_custom_call.1} parent=0
    #allocation2 [shape = 'u8[688128]{0}', space=vmem, size = 0xa8000, scoped, tag = 'input window, operand 1, single buffered']
    #allocation3 [shape = 's32[1]{0}', space=sflag, size = 0x4, scoped, tag = 'scoped memory for tpu_custom_call.1']
    #allocation4 [shape = 's32[1]{0}', space=sflag, size = 0x4, scoped, tag = 'scoped memory for tpu_custom_call.1']
    #allocation5 [shape = 'u8[393216]{0}', space=vmem, size = 0x60000, scoped, tag = 'input window, operand 8, single buffered']
    #allocation6 [shape = 's32[1]{0}', space=sflag, size = 0x4, scoped, tag = 'scoped memory for tpu_custom_call.1']
    #allocation7 [shape = 'u8[4096]{0}', space=vmem, size = 0x1000, scoped, tag = 'output window, operand 0, single buffered']
    %14 = vsyncpa [#allocation3], 0
    %15 = vsyncpa [#allocation6], 0
    %16 = vsyncpa [#allocation4], 0
    // Predicated region
    $region2: #{tpu_custom_call.1} parent=1 // pred_check
      _
    $region3: #{tpu_custom_call.1} parent=1 // pred_check_branch
      %18 = sbr.rel (0) target = $region5
    $region4: #{tpu_custom_call.1} parent=1 // pred_region
      _
    $region5: #{tpu_custom_call.1} parent=1 // pred_fallthru
      _
    // Predicated region
    $region6: #{tpu_custom_call.1} parent=1 // pred_check
      _
    $region7: #{tpu_custom_call.1} parent=1 // pred_check_branch
      %20 = sbr.rel (0) target = $region9
    $region8: #{tpu_custom_call.1} parent=1 // pred_region
      %22 = vsyncadd [#allocation3], 0
      %s23 = sshll.u32 %s1, 4
      %s24 = int_to_ptr.hbm [resolvable:$true] %s23
      %s25 = sshll.u32 [#allocation2], 4
      %s26 = int_to_ptr.vmem [resolvable:$true] %s25
      %31 = dma.hbm_to_vmem [thread:$0]  %s24, 21504, %s26, [#allocation3], 128, 128, 8
    $region9: #{tpu_custom_call.1} parent=1 // pred_fallthru
      _
    // Predicated region
    $region10: #{tpu_custom_call.1} parent=1 // pred_check
      _
    $region11: #{tpu_custom_call.1} parent=1 // pred_check_branch
      %33 = sbr.rel (0) target = $region13
    $region12: #{tpu_custom_call.1} parent=1 // pred_region
      _
    $region13: #{tpu_custom_call.1} parent=1 // pred_fallthru
      _
    // Predicated region
    $region14: #{tpu_custom_call.1} parent=1 // pred_check
      _
    $region15: #{tpu_custom_call.1} parent=1 // pred_check_branch
      %35 = sbr.rel (0) target = $region17
    $region16: #{tpu_custom_call.1} parent=1 // pred_region
      _
    $region17: #{tpu_custom_call.1} parent=1 // pred_fallthru
      _
    // Predicated region
    $region18: #{tpu_custom_call.1} parent=1 // pred_check
      _
    $region19: #{tpu_custom_call.1} parent=1 // pred_check_branch
      %37 = sbr.rel (0) target = $region21
    $region20: #{tpu_custom_call.1} parent=1 // pred_region
      _
    $region21: #{tpu_custom_call.1} parent=1 // pred_fallthru
      _
    // Predicated region
    $region22: #{tpu_custom_call.1} parent=1 // pred_check
      _
    $region23: #{tpu_custom_call.1} parent=1 // pred_check_branch
      %39 = sbr.rel (0) target = $region25
    $region24: #{tpu_custom_call.1} parent=1 // pred_region
      _
    $region25: #{tpu_custom_call.1} parent=1 // pred_fallthru
      _
    // Predicated region
    $region26: #{tpu_custom_call.1} parent=1 // pred_check
      _
    $region27: #{tpu_custom_call.1} parent=1 // pred_check_branch
      %41 = sbr.rel (0) target = $region29
    $region28: #{tpu_custom_call.1} parent=1 // pred_region
      _
    $region29: #{tpu_custom_call.1} parent=1 // pred_fallthru
      _
    // Predicated region
    $region30: #{tpu_custom_call.1} parent=1 // pred_check
      _
    $region31: #{tpu_custom_call.1} parent=1 // pred_check_branch
      %43 = sbr.rel (0) target = $region33
    $region32: #{tpu_custom_call.1} parent=1 // pred_region
      _
    $region33: #{tpu_custom_call.1} parent=1 // pred_fallthru
      _
    // Predicated region
    $region34: #{tpu_custom_call.1} parent=1 // pred_check
      _
    $region35: #{tpu_custom_call.1} parent=1 // pred_check_branch
      %45 = sbr.rel (0) target = $region37
    $region36: #{tpu_custom_call.1} parent=1 // pred_region
      %47 = vsyncadd [#allocation6], 0
      %s48 = sshll.u32 %s8, 4
      %s49 = int_to_ptr.hbm [resolvable:$true] %s48
      %s50 = sshll.u32 [#allocation5], 4
      %s51 = int_to_ptr.vmem [resolvable:$true] %s50
      %56 = dma.hbm_to_vmem [thread:$0]  %s49, 12288, %s51, [#allocation6], 128, 128, 8
    $region37: #{tpu_custom_call.1} parent=1 // pred_fallthru
      _
    // Predicated region
    $region38: #{tpu_custom_call.1} parent=1 // pred_check
      _
    $region39: #{tpu_custom_call.1} parent=1 // pred_check_branch
      %58 = sbr.rel (0) target = $region41
    $region40: #{tpu_custom_call.1} parent=1 // pred_region
      %60 = dma.done [#allocation3], 21504
    $region41: #{tpu_custom_call.1} parent=1 // pred_fallthru
      _
    // Predicated region
    $region42: #{tpu_custom_call.1} parent=1 // pred_check
      _
    $region43: #{tpu_custom_call.1} parent=1 // pred_check_branch
      %62 = sbr.rel (0) target = $region45
    $region44: #{tpu_custom_call.1} parent=1 // pred_region
      %64 = dma.done [#allocation6], 12288
    $region45: #{tpu_custom_call.1} parent=1 // pred_fallthru
      _
    %v66 = vld [vmem:[%s3] sm:$0xff]
    %v67 = vld [vmem:[%s3 + $0x8] sm:$0xff]
    %v68 = vld [vmem:[%s3 + $0x10] sm:$0xff]
    %v69 = vld [vmem:[%s3 + $0x18] sm:$0xff]
    %v70 = vld [vmem:[%s3 + $0x20] sm:$0x3f]
    %v71 = vld [vmem:[%s0] sm:$0xff]
    %v72 = vld [vmem:[%s0 + $0x8] sm:$0xff]
    %v73 = vld [vmem:[%s0 + $0x10] sm:$0xff]
    %v74 = vld [vmem:[%s0 + $0x18] sm:$0xff]
    %v75 = vld [vmem:[%s0 + $0x20] sm:$0xff]
    %v76 = vld [vmem:[%s0 + $0x28] sm:$0xff]
    %v77 = vld [vmem:[%s0 + $0x30] sm:$0xff]
    %v78 = vld [vmem:[%s0 + $0x38] sm:$0xff]
    %vm79 = vcmask 261120
    %v81 = vsel %vm79, %v66, 0
    %v84 = vsel %vm79, %v67, 0
    %v87 = vsel %vm79, %v68, 0
    %v90 = vsel %vm79, %v69, 0
    %v93 = vsel %vm79, %v70, 0
    %95 = vmatpush.msra.mxu0 0.0
    %96 = vmatpush.msra.mxu0 0.0
    %97 = vmatpush.msra.mxu0 0.0
    %98 = vmatpush.msra.mxu0 0.0
    %99 = vmatpush.msra.mxu0 0.0
    %100 = vmatpush.msra.mxu0 0.0
    %101 = vmatpush.msra.mxu0 0.0
    %102 = vmatpush.msra.mxu0 0.0
    %103 = vmatpush.msra.mxu0 0.0
    %104 = vmatpush.msra.mxu0 0.0
    %105 = vmatpush.msra.mxu0 0.0
    %106 = vmatpush.msra.mxu0 0.0
    %107 = vmatpush.msra.mxu0 %v77
    %108 = vmatpush.msra.mxu0 %v75
    %109 = vmatpush.msra.mxu0 %v73
    %110 = vmatpush.msra.mxu0 %v71
    %111 = vmatmul.f32.gmra.mxu0 %v81
    %v112 = vpop.f32.mrf.mxu0
    %v113 = vadd.f32 0.0, %v112
    %114 = vmatmul.f32.gmra.mxu0 %v84
    %v115 = vpop.f32.mrf.mxu0
    %v116 = vadd.f32 0.0, %v115
    %117 = vmatmul.f32.gmra.mxu0 %v87
    %v118 = vpop.f32.mrf.mxu0
    %v119 = vadd.f32 0.0, %v118
    %120 = vmatmul.f32.gmra.mxu0 %v90
    %v121 = vpop.f32.mrf.mxu0
    %v122 = vadd.f32 0.0, %v121
    %123 = vmatmul.f32.gmra.mxu0 %v93
    %v124 = vpop.f32.mrf.mxu0
    %v125 = vadd.f32 0.0, %v124
    %126 = vdwg.mxu0
    %127 = vmatpush.msra.mxu0 0.0
    %128 = vmatpush.msra.mxu0 0.0
    %129 = vmatpush.msra.mxu0 0.0
    %130 = vmatpush.msra.mxu0 0.0
    %131 = vmatpush.msra.mxu0 0.0
    %132 = vmatpush.msra.mxu0 0.0
    %133 = vmatpush.msra.mxu0 0.0
    %134 = vmatpush.msra.mxu0 0.0
    %135 = vmatpush.msra.mxu0 0.0
    %136 = vmatpush.msra.mxu0 0.0
    %137 = vmatpush.msra.mxu0 0.0
    %138 = vmatpush.msra.mxu0 0.0
    %139 = vmatpush.msra.mxu0 %v78
    %140 = vmatpush.msra.mxu0 %v76
    %141 = vmatpush.msra.mxu0 %v74
    %142 = vmatpush.msra.mxu0 %v72
    %143 = vmatmul.f32.gmra.mxu0 %v81
    %v144 = vpop.f32.mrf.mxu0
    %v145 = vadd.f32 0.0, %v144
    %146 = vmatmul.f32.gmra.mxu0 %v84
    %v147 = vpop.f32.mrf.mxu0
    %v148 = vadd.f32 0.0, %v147
    %149 = vmatmul.f32.gmra.mxu0 %v87
    %v150 = vpop.f32.mrf.mxu0
    %v151 = vadd.f32 0.0, %v150
    %152 = vmatmul.f32.gmra.mxu0 %v90
    %v153 = vpop.f32.mrf.mxu0
    %v154 = vadd.f32 0.0, %v153
    %155 = vmatmul.f32.gmra.mxu0 %v93
    %v156 = vpop.f32.mrf.mxu0
    %v157 = vadd.f32 0.0, %v156
    %158 = vdwg.mxu0
    %v159 = vpack.c.bf16 %v116, %v113
    %v160 = vpack.c.bf16 %v148, %v145
    %v161 = vpack.c.bf16 %v122, %v119
    %v162 = vpack.c.bf16 %v154, %v151
    %v163 = vld [vmem:[#allocation2] sm:$0xff]
    %v164 = vld [vmem:[#allocation2 + $0x8] sm:$0xff]
    %v165 = vld [vmem:[#allocation2 + $0x10] sm:$0xff]
    %v166 = vld [vmem:[#allocation2 + $0x18] sm:$0xff]
    %v167 = vld [vmem:[#allocation2 + $0x20] sm:$0xff]
    %v168 = vld [vmem:[#allocation2 + $0x28] sm:$0xff]
    %v169 = vld [vmem:[#allocation2 + $0x30] sm:$0xff]
    %v170 = vld [vmem:[#allocation2 + $0x38] sm:$0xff]
    %v171 = vld [vmem:[#allocation2 + $0x40] sm:$0xff]
    %v172 = vld [vmem:[#allocation2 + $0x48] sm:$0xff]
    %v173 = vld [vmem:[#allocation2 + $0x50] sm:$0xff]
    %v174 = vld [vmem:[#allocation2 + $0x58] sm:$0xff]
    %v175 = vld [vmem:[#allocation2 + $0x60] sm:$0xff]
    %v176 = vld [vmem:[#allocation2 + $0x68] sm:$0xff]
    %v177 = vld [vmem:[#allocation2 + $0x70] sm:$0xff]
    %v178 = vld [vmem:[#allocation2 + $0x78] sm:$0xff]
    %v179 = vld [vmem:[#allocation2 + $0x80] sm:$0xff]
    %v180 = vld [vmem:[#allocation2 + $0x88] sm:$0xff]
    %v181 = vld [vmem:[#allocation2 + $0x90] sm:$0xff]
    %v182 = vld [vmem:[#allocation2 + $0x98] sm:$0xff]
    %v183 = vld [vmem:[#allocation2 + $0xa0] sm:$0xff]
    %v184 = vld [vmem:[#allocation2 + $0xa8] sm:$0xff]
    %v185 = vld [vmem:[#allocation2 + $0xb0] sm:$0xff]
    %v186 = vld [vmem:[#allocation2 + $0xb8] sm:$0xff]
    %s187 = scalar_lea.vmem [#allocation2], 192
    %v188 = vld [vmem:[%s187] sm:$0xff]
    %v189 = vld [vmem:[%s187 + $0x8] sm:$0xff]
    %v190 = vld [vmem:[%s187 + $0x10] sm:$0xff]
    %v191 = vld [vmem:[%s187 + $0x18] sm:$0xff]
    %v192 = vld [vmem:[%s187 + $0x20] sm:$0xff]
    %v193 = vld [vmem:[%s187 + $0x28] sm:$0xff]
    %v194 = vld [vmem:[%s187 + $0x30] sm:$0xff]
    %v195 = vld [vmem:[%s187 + $0x38] sm:$0xff]
    %v196 = vld [vmem:[%s187 + $0x40] sm:$0xff]
    %v197 = vld [vmem:[%s187 + $0x48] sm:$0xff]
    %v198 = vld [vmem:[%s187 + $0x50] sm:$0xff]
    %v199 = vld [vmem:[%s187 + $0x58] sm:$0xff]
    %v200 = vld [vmem:[%s187 + $0x60] sm:$0xff]
    %v201 = vld [vmem:[%s187 + $0x68] sm:$0xff]
    %v202 = vld [vmem:[%s187 + $0x70] sm:$0xff]
    %v203 = vld [vmem:[%s187 + $0x78] sm:$0xff]
    %v204 = vld [vmem:[%s187 + $0x80] sm:$0xff]
    %v205 = vld [vmem:[%s187 + $0x88] sm:$0xff]
    %v206 = vld [vmem:[%s187 + $0x90] sm:$0xff]
    %v207 = vld [vmem:[%s187 + $0x98] sm:$0xff]
    %v208 = vld [vmem:[%s187 + $0xa0] sm:$0xff]
    %v209 = vld [vmem:[%s187 + $0xa8] sm:$0xff]
    %v210 = vld [vmem:[%s187 + $0xb0] sm:$0xff]
    %v211 = vld [vmem:[%s187 + $0xb8] sm:$0xff]
    %vm212 = vsmask.f32 7424
    %v214 = vshrl.u32 %v159, 16
    %v216 = vshll.u32 %v159, 16
    %v218 = vrot.slane %v216, 1
    %v219 = vor.u32 %v214, %v218
    %v221 = vshll.u32 %v161, 16
    %v223 = vrot.slane %v221, 1
    %v224 = vsel %vm212, %v219, %v223
    %v226 = vshrl.u32 %v160, 16
    %v228 = vshll.u32 %v160, 16
    %v230 = vrot.slane %v228, 1
    %v231 = vor.u32 %v226, %v230
    %v233 = vshll.u32 %v162, 16
    %v235 = vrot.slane %v233, 1
    %v236 = vsel %vm212, %v231, %v235
    %v237 = vshrl.u32 %v161, 16
    %v239 = vor.u32 %v237, %v223
    %v240 = vshrl.u32 %v162, 16
    %v242 = vor.u32 %v240, %v235
    %v269 = vunpack.c.l.b16 %v188
    %v270 = vunpack.c.h.b16 %v188
    %v271 = vunpack.c.l.b16 %v189
    %v272 = vunpack.c.h.b16 %v189
    %v273 = vunpack.c.l.b16 %v190
    %v274 = vunpack.c.h.b16 %v190
    %v275 = vunpack.c.l.b16 %v191
    %v276 = vunpack.c.h.b16 %v191
    %v277 = vunpack.c.l.b16 %v192
    %v278 = vunpack.c.h.b16 %v192
    %v279 = vunpack.c.l.b16 %v193
    %v280 = vunpack.c.h.b16 %v193
    %v281 = vunpack.c.l.b16 %v194
    %v282 = vunpack.c.h.b16 %v194
    %v283 = vunpack.c.l.b16 %v195
    %v284 = vunpack.c.h.b16 %v195
    %v285 = vunpack.c.l.b16 %v196
    %v286 = vunpack.c.h.b16 %v196
    %v287 = vunpack.c.l.b16 %v197
    %v288 = vunpack.c.h.b16 %v197
    %v289 = vunpack.c.l.b16 %v198
    %v290 = vunpack.c.h.b16 %v198
    %v291 = vunpack.c.l.b16 %v199
    %v292 = vunpack.c.h.b16 %v199
    %v293 = vunpack.c.l.b16 %v200
    %v294 = vunpack.c.h.b16 %v200
    %v295 = vunpack.c.l.b16 %v201
    %v296 = vunpack.c.h.b16 %v201
    %v297 = vunpack.c.l.b16 %v202
    %v298 = vunpack.c.h.b16 %v202
    %v299 = vunpack.c.l.b16 %v203
    %v300 = vunpack.c.h.b16 %v203
    %v301 = vunpack.c.l.b16 %v204
    %v302 = vunpack.c.h.b16 %v204
    %v303 = vunpack.c.l.b16 %v205
    %v304 = vunpack.c.h.b16 %v205
    %v305 = vunpack.c.l.b16 %v206
    %v306 = vunpack.c.h.b16 %v206
    %v307 = vunpack.c.l.b16 %v207
    %v308 = vunpack.c.h.b16 %v207
    %v309 = vunpack.c.l.b16 %v208
    %v310 = vunpack.c.h.b16 %v208
    %v311 = vunpack.c.l.b16 %v209
    %v312 = vunpack.c.h.b16 %v209
    %v313 = vunpack.c.l.b16 %v210
    %v314 = vunpack.c.h.b16 %v210
    %v315 = vunpack.c.l.b16 %v211
    %v316 = vunpack.c.h.b16 %v211
    %v317 = vpack.c.b16 %v271, %v269
    %v318 = vpack.c.b16 %v272, %v270
    %v319 = vpack.c.b16 %v275, %v273
    %v320 = vpack.c.b16 %v276, %v274
    %v321 = vpack.c.b16 %v279, %v277
    %v322 = vpack.c.b16 %v280, %v278
    %v323 = vpack.c.b16 %v283, %v281
    %v324 = vpack.c.b16 %v284, %v282
    %v325 = vpack.c.b16 %v287, %v285
    %v326 = vpack.c.b16 %v288, %v286
    %v327 = vpack.c.b16 %v291, %v289
    %v328 = vpack.c.b16 %v292, %v290
    %v329 = vpack.c.b16 %v295, %v293
    %v330 = vpack.c.b16 %v296, %v294
    %v331 = vpack.c.b16 %v299, %v297
    %v332 = vpack.c.b16 %v300, %v298
    %v333 = vpack.c.b16 %v303, %v301
    %v334 = vpack.c.b16 %v304, %v302
    %v335 = vpack.c.b16 %v307, %v305
    %v336 = vpack.c.b16 %v308, %v306
    %v337 = vpack.c.b16 %v311, %v309
    %v338 = vpack.c.b16 %v312, %v310
    %v339 = vpack.c.b16 %v315, %v313
    %v340 = vpack.c.b16 %v316, %v314
    %vm365 = vcmask 523264
    %v367 = vsel %vm365, %v236, 0
    %v370 = vsel %vm365, %v242, 0
    %372 = vmatpush.bf16.msra.mxu0 %v331
    %373 = vmatpush.bf16.msra.mxu0 %v329
    %374 = vmatpush.bf16.msra.mxu0 %v327
    %375 = vmatpush.bf16.msra.mxu0 %v325
    %376 = vmatpush.bf16.msra.mxu0 %v323
    %377 = vmatpush.bf16.msra.mxu0 %v321
    %378 = vmatpush.bf16.msra.mxu0 %v319
    %379 = vmatpush.bf16.msra.mxu0 %v317
    %380 = vmatmul.bf16.gmra.mxu0 %v224
    %v381 = vpop.f32.mrf.mxu0
    %v382 = vadd.f32 0.0, %v381
    %v383 = vpop.f32.mrf.mxu0
    %v384 = vadd.f32 0.0, %v383
    %385 = vmatmul.bf16.gmra.mxu0 %v239
    %v386 = vpop.f32.mrf.mxu0
    %v387 = vadd.f32 0.0, %v386
    %v388 = vpop.f32.mrf.mxu0
    %v389 = vadd.f32 0.0, %v388
    %390 = vdwg.mxu0
    %391 = vmatpush.bf16.msra.mxu0 0
    %392 = vmatpush.bf16.msra.mxu0 0
    %393 = vmatpush.bf16.msra.mxu0 0
    %394 = vmatpush.bf16.msra.mxu0 0
    %395 = vmatpush.bf16.msra.mxu0 %v339
    %396 = vmatpush.bf16.msra.mxu0 %v337
    %397 = vmatpush.bf16.msra.mxu0 %v335
    %398 = vmatpush.bf16.msra.mxu0 %v333
    %399 = vmatmul.bf16.gmra.mxu0 %v367
    %v400 = vpop.f32.mrf.mxu0
    %v401 = vadd.f32 %v382, %v400
    %v402 = vpop.f32.mrf.mxu0
    %v403 = vadd.f32 %v384, %v402
    %404 = vmatmul.bf16.gmra.mxu0 %v370
    %v405 = vpop.f32.mrf.mxu0
    %v406 = vadd.f32 %v387, %v405
    %v407 = vpop.f32.mrf.mxu0
    %v408 = vadd.f32 %v389, %v407
    %409 = vdwg.mxu0
    %410 = vmatpush.bf16.msra.mxu0 %v332
    %411 = vmatpush.bf16.msra.mxu0 %v330
    %412 = vmatpush.bf16.msra.mxu0 %v328
    %413 = vmatpush.bf16.msra.mxu0 %v326
    %414 = vmatpush.bf16.msra.mxu0 %v324
    %415 = vmatpush.bf16.msra.mxu0 %v322
    %416 = vmatpush.bf16.msra.mxu0 %v320
    %417 = vmatpush.bf16.msra.mxu0 %v318
    %418 = vmatmul.bf16.gmra.mxu0 %v224
    %v419 = vpop.f32.mrf.mxu0
    %v420 = vadd.f32 0.0, %v419
    %v421 = vpop.f32.mrf.mxu0
    %v422 = vadd.f32 0.0, %v421
    %423 = vmatmul.bf16.gmra.mxu0 %v239
    %v424 = vpop.f32.mrf.mxu0
    %v425 = vadd.f32 0.0, %v424
    %v426 = vpop.f32.mrf.mxu0
    %v427 = vadd.f32 0.0, %v426
    %428 = vdwg.mxu0
    %429 = vmatpush.bf16.msra.mxu0 0
    %430 = vmatpush.bf16.msra.mxu0 0
    %431 = vmatpush.bf16.msra.mxu0 0
    %432 = vmatpush.bf16.msra.mxu0 0
    %433 = vmatpush.bf16.msra.mxu0 %v340
    %434 = vmatpush.bf16.msra.mxu0 %v338
    %435 = vmatpush.bf16.msra.mxu0 %v336
    %436 = vmatpush.bf16.msra.mxu0 %v334
    %437 = vmatmul.bf16.gmra.mxu0 %v367
    %v438 = vpop.f32.mrf.mxu0
    %v439 = vadd.f32 %v420, %v438
    %v440 = vpop.f32.mrf.mxu0
    %v441 = vadd.f32 %v422, %v440
    %442 = vmatmul.bf16.gmra.mxu0 %v370
    %v443 = vpop.f32.mrf.mxu0
    %v444 = vadd.f32 %v425, %v443
    %v445 = vpop.f32.mrf.mxu0
    %v446 = vadd.f32 %v427, %v445
    %447 = vdwg.mxu0
    %v472 = vunpack.c.l.b16 %v163
    %v473 = vunpack.c.h.b16 %v163
    %v474 = vunpack.c.l.b16 %v164
    %v475 = vunpack.c.h.b16 %v164
    %v476 = vunpack.c.l.b16 %v165
    %v477 = vunpack.c.h.b16 %v165
    %v478 = vunpack.c.l.b16 %v166
    %v479 = vunpack.c.h.b16 %v166
    %v480 = vunpack.c.l.b16 %v167
    %v481 = vunpack.c.h.b16 %v167
    %v482 = vunpack.c.l.b16 %v168
    %v483 = vunpack.c.h.b16 %v168
    %v484 = vunpack.c.l.b16 %v169
    %v485 = vunpack.c.h.b16 %v169
    %v486 = vunpack.c.l.b16 %v170
    %v487 = vunpack.c.h.b16 %v170
    %v488 = vunpack.c.l.b16 %v171
    %v489 = vunpack.c.h.b16 %v171
    %v490 = vunpack.c.l.b16 %v172
    %v491 = vunpack.c.h.b16 %v172
    %v492 = vunpack.c.l.b16 %v173
    %v493 = vunpack.c.h.b16 %v173
    %v494 = vunpack.c.l.b16 %v174
    %v495 = vunpack.c.h.b16 %v174
    %v496 = vunpack.c.l.b16 %v175
    %v497 = vunpack.c.h.b16 %v175
    %v498 = vunpack.c.l.b16 %v176
    %v499 = vunpack.c.h.b16 %v176
    %v500 = vunpack.c.l.b16 %v177
    %v501 = vunpack.c.h.b16 %v177
    %v502 = vunpack.c.l.b16 %v178
    %v503 = vunpack.c.h.b16 %v178
    %v504 = vunpack.c.l.b16 %v179
    %v505 = vunpack.c.h.b16 %v179
    %v506 = vunpack.c.l.b16 %v180
    %v507 = vunpack.c.h.b16 %v180
    %v508 = vunpack.c.l.b16 %v181
    %v509 = vunpack.c.h.b16 %v181
    %v510 = vunpack.c.l.b16 %v182
    %v511 = vunpack.c.h.b16 %v182
    %v512 = vunpack.c.l.b16 %v183
    %v513 = vunpack.c.h.b16 %v183
    %v514 = vunpack.c.l.b16 %v184
    %v515 = vunpack.c.h.b16 %v184
    %v516 = vunpack.c.l.b16 %v185
    %v517 = vunpack.c.h.b16 %v185
    %v518 = vunpack.c.l.b16 %v186
    %v519 = vunpack.c.h.b16 %v186
    %v520 = vpack.c.b16 %v474, %v472
    %v521 = vpack.c.b16 %v475, %v473
    %v522 = vpack.c.b16 %v478, %v476
    %v523 = vpack.c.b16 %v479, %v477
    %v524 = vpack.c.b16 %v482, %v480
    %v525 = vpack.c.b16 %v483, %v481
    %v526 = vpack.c.b16 %v486, %v484
    %v527 = vpack.c.b16 %v487, %v485
    %v528 = vpack.c.b16 %v490, %v488
    %v529 = vpack.c.b16 %v491, %v489
    %v530 = vpack.c.b16 %v494, %v492
    %v531 = vpack.c.b16 %v495, %v493
    %v532 = vpack.c.b16 %v498, %v496
    %v533 = vpack.c.b16 %v499, %v497
    %v534 = vpack.c.b16 %v502, %v500
    %v535 = vpack.c.b16 %v503, %v501
    %v536 = vpack.c.b16 %v506, %v504
    %v537 = vpack.c.b16 %v507, %v505
    %v538 = vpack.c.b16 %v510, %v508
    %v539 = vpack.c.b16 %v511, %v509
    %v540 = vpack.c.b16 %v514, %v512
    %v541 = vpack.c.b16 %v515, %v513
    %v542 = vpack.c.b16 %v518, %v516
    %v543 = vpack.c.b16 %v519, %v517
    %v568 = vsel %vm365, %v160, 0
    %v570 = vsel %vm365, %v162, 0
    %572 = vmatpush.bf16.msra.mxu0 %v534
    %573 = vmatpush.bf16.msra.mxu0 %v532
    %574 = vmatpush.bf16.msra.mxu0 %v530
    %575 = vmatpush.bf16.msra.mxu0 %v528
    %576 = vmatpush.bf16.msra.mxu0 %v526
    %577 = vmatpush.bf16.msra.mxu0 %v524
    %578 = vmatpush.bf16.msra.mxu0 %v522
    %579 = vmatpush.bf16.msra.mxu0 %v520
    %580 = vmatmul.bf16.gmra.mxu0 %v159
    %v581 = vpop.f32.mrf.mxu0
    %v582 = vadd.f32 %v401, %v581
    %v583 = vpop.f32.mrf.mxu0
    %v584 = vadd.f32 %v403, %v583
    %585 = vmatmul.bf16.gmra.mxu0 %v161
    %v586 = vpop.f32.mrf.mxu0
    %v587 = vadd.f32 %v406, %v586
    %v588 = vpop.f32.mrf.mxu0
    %v589 = vadd.f32 %v408, %v588
    %590 = vdwg.mxu0
    %591 = vmatpush.bf16.msra.mxu0 0
    %592 = vmatpush.bf16.msra.mxu0 0
    %593 = vmatpush.bf16.msra.mxu0 0
    %594 = vmatpush.bf16.msra.mxu0 0
    %595 = vmatpush.bf16.msra.mxu0 %v542
    %596 = vmatpush.bf16.msra.mxu0 %v540
    %597 = vmatpush.bf16.msra.mxu0 %v538
    %598 = vmatpush.bf16.msra.mxu0 %v536
    %599 = vmatmul.bf16.gmra.mxu0 %v568
    %v600 = vpop.f32.mrf.mxu0
    %v601 = vadd.f32 %v582, %v600
    %v602 = vpop.f32.mrf.mxu0
    %v603 = vadd.f32 %v584, %v602
    %604 = vmatmul.bf16.gmra.mxu0 %v570
    %v605 = vpop.f32.mrf.mxu0
    %v606 = vadd.f32 %v587, %v605
    %v607 = vpop.f32.mrf.mxu0
    %v608 = vadd.f32 %v589, %v607
    %609 = vdwg.mxu0
    %610 = vmatpush.bf16.msra.mxu0 %v535
    %611 = vmatpush.bf16.msra.mxu0 %v533
    %612 = vmatpush.bf16.msra.mxu0 %v531
    %613 = vmatpush.bf16.msra.mxu0 %v529
    %614 = vmatpush.bf16.msra.mxu0 %v527
    %615 = vmatpush.bf16.msra.mxu0 %v525
    %616 = vmatpush.bf16.msra.mxu0 %v523
    %617 = vmatpush.bf16.msra.mxu0 %v521
    %618 = vmatmul.bf16.gmra.mxu0 %v159
    %v619 = vpop.f32.mrf.mxu0
    %v620 = vadd.f32 %v439, %v619
    %v621 = vpop.f32.mrf.mxu0
    %v622 = vadd.f32 %v441, %v621
    %623 = vmatmul.bf16.gmra.mxu0 %v161
    %v624 = vpop.f32.mrf.mxu0
    %v625 = vadd.f32 %v444, %v624
    %v626 = vpop.f32.mrf.mxu0
    %v627 = vadd.f32 %v446, %v626
    %628 = vdwg.mxu0
    %629 = vmatpush.bf16.msra.mxu0 0
    %630 = vmatpush.bf16.msra.mxu0 0
    %631 = vmatpush.bf16.msra.mxu0 0
    %632 = vmatpush.bf16.msra.mxu0 0
    %633 = vmatpush.bf16.msra.mxu0 %v543
    %634 = vmatpush.bf16.msra.mxu0 %v541
    %635 = vmatpush.bf16.msra.mxu0 %v539
    %636 = vmatpush.bf16.msra.mxu0 %v537
    %637 = vmatmul.bf16.gmra.mxu0 %v568
    %v638 = vpop.f32.mrf.mxu0
    %v639 = vadd.f32 %v620, %v638
    %v640 = vpop.f32.mrf.mxu0
    %v641 = vadd.f32 %v622, %v640
    %642 = vmatmul.bf16.gmra.mxu0 %v570
    %v643 = vpop.f32.mrf.mxu0
    %v644 = vadd.f32 %v625, %v643
    %v645 = vpop.f32.mrf.mxu0
    %v646 = vadd.f32 %v627, %v645
    %647 = vdwg.mxu0
    %v648 = vpack.c.bf16 %v125, %v125
    %v649 = vpack.c.bf16 %v157, %v157
    %s650 = scalar_lea.vmem [#allocation2], 384
    %v651 = vld [vmem:[%s650] sm:$0xff]
    %v652 = vld [vmem:[%s650 + $0x8] sm:$0xff]
    %v653 = vld [vmem:[%s650 + $0x10] sm:$0xff]
    %v654 = vld [vmem:[%s650 + $0x18] sm:$0xff]
    %v655 = vld [vmem:[%s650 + $0x20] sm:$0xff]
    %v656 = vld [vmem:[%s650 + $0x28] sm:$0xff]
    %v657 = vld [vmem:[%s650 + $0x30] sm:$0xff]
    %v658 = vld [vmem:[%s650 + $0x38] sm:$0xff]
    %v659 = vld [vmem:[%s650 + $0x40] sm:$0xff]
    %v660 = vld [vmem:[%s650 + $0x48] sm:$0xff]
    %v661 = vld [vmem:[%s650 + $0x50] sm:$0xff]
    %v662 = vld [vmem:[%s650 + $0x58] sm:$0xff]
    %v663 = vld [vmem:[%s650 + $0x60] sm:$0xff]
    %v664 = vld [vmem:[%s650 + $0x68] sm:$0xff]
    %v665 = vld [vmem:[%s650 + $0x70] sm:$0xff]
    %v666 = vld [vmem:[%s650 + $0x78] sm:$0xff]
    %v667 = vld [vmem:[%s650 + $0x80] sm:$0xff]
    %v668 = vld [vmem:[%s650 + $0x88] sm:$0xff]
    %v669 = vld [vmem:[%s650 + $0x90] sm:$0xff]
    %v670 = vld [vmem:[%s650 + $0x98] sm:$0xff]
    %v671 = vld [vmem:[%s650 + $0xa0] sm:$0xff]
    %v672 = vld [vmem:[%s650 + $0xa8] sm:$0xff]
    %v673 = vld [vmem:[%s650 + $0xb0] sm:$0xff]
    %v674 = vld [vmem:[%s650 + $0xb8] sm:$0xff]
    %vm681 = vcmask 1046528
    %v682 = vrot.slane %v159, 1
    %v683 = vrot.slane %v161, 1
    %v684 = vsel %vm681, %v682, %v683
    %v685 = vrot.slane %v160, 1
    %v686 = vrot.slane %v162, 1
    %v687 = vsel %vm681, %v685, %v686
    %v688 = vrot.slane %v648, 1
    %v689 = vsel %vm681, %v683, %v688
    %v690 = vrot.slane %v649, 1
    %v691 = vsel %vm681, %v686, %v690
    %v718 = vunpack.c.l.b16 %v651
    %v719 = vunpack.c.h.b16 %v651
    %v720 = vunpack.c.l.b16 %v652
    %v721 = vunpack.c.h.b16 %v652
    %v722 = vunpack.c.l.b16 %v653
    %v723 = vunpack.c.h.b16 %v653
    %v724 = vunpack.c.l.b16 %v654
    %v725 = vunpack.c.h.b16 %v654
    %v726 = vunpack.c.l.b16 %v655
    %v727 = vunpack.c.h.b16 %v655
    %v728 = vunpack.c.l.b16 %v656
    %v729 = vunpack.c.h.b16 %v656
    %v730 = vunpack.c.l.b16 %v657
    %v731 = vunpack.c.h.b16 %v657
    %v732 = vunpack.c.l.b16 %v658
    %v733 = vunpack.c.h.b16 %v658
    %v734 = vunpack.c.l.b16 %v659
    %v735 = vunpack.c.h.b16 %v659
    %v736 = vunpack.c.l.b16 %v660
    %v737 = vunpack.c.h.b16 %v660
    %v738 = vunpack.c.l.b16 %v661
    %v739 = vunpack.c.h.b16 %v661
    %v740 = vunpack.c.l.b16 %v662
    %v741 = vunpack.c.h.b16 %v662
    %v742 = vunpack.c.l.b16 %v663
    %v743 = vunpack.c.h.b16 %v663
    %v744 = vunpack.c.l.b16 %v664
    %v745 = vunpack.c.h.b16 %v664
    %v746 = vunpack.c.l.b16 %v665
    %v747 = vunpack.c.h.b16 %v665
    %v748 = vunpack.c.l.b16 %v666
    %v749 = vunpack.c.h.b16 %v666
    %v750 = vunpack.c.l.b16 %v667
    %v751 = vunpack.c.h.b16 %v667
    %v752 = vunpack.c.l.b16 %v668
    %v753 = vunpack.c.h.b16 %v668
    %v754 = vunpack.c.l.b16 %v669
    %v755 = vunpack.c.h.b16 %v669
    %v756 = vunpack.c.l.b16 %v670
    %v757 = vunpack.c.h.b16 %v670
    %v758 = vunpack.c.l.b16 %v671
    %v759 = vunpack.c.h.b16 %v671
    %v760 = vunpack.c.l.b16 %v672
    %v761 = vunpack.c.h.b16 %v672
    %v762 = vunpack.c.l.b16 %v673
    %v763 = vunpack.c.h.b16 %v673
    %v764 = vunpack.c.l.b16 %v674
    %v765 = vunpack.c.h.b16 %v674
    %v766 = vpack.c.b16 %v720, %v718
    %v767 = vpack.c.b16 %v721, %v719
    %v768 = vpack.c.b16 %v724, %v722
    %v769 = vpack.c.b16 %v725, %v723
    %v770 = vpack.c.b16 %v728, %v726
    %v771 = vpack.c.b16 %v729, %v727
    %v772 = vpack.c.b16 %v732, %v730
    %v773 = vpack.c.b16 %v733, %v731
    %v774 = vpack.c.b16 %v736, %v734
    %v775 = vpack.c.b16 %v737, %v735
    %v776 = vpack.c.b16 %v740, %v738
    %v777 = vpack.c.b16 %v741, %v739
    %v778 = vpack.c.b16 %v744, %v742
    %v779 = vpack.c.b16 %v745, %v743
    %v780 = vpack.c.b16 %v748, %v746
    %v781 = vpack.c.b16 %v749, %v747
    %v782 = vpack.c.b16 %v752, %v750
    %v783 = vpack.c.b16 %v753, %v751
    %v784 = vpack.c.b16 %v756, %v754
    %v785 = vpack.c.b16 %v757, %v755
    %v786 = vpack.c.b16 %v760, %v758
    %v787 = vpack.c.b16 %v761, %v759
    %v788 = vpack.c.b16 %v764, %v762
    %v789 = vpack.c.b16 %v765, %v763
    %v815 = vsel %vm365, %v687, 0
    %v818 = vsel %vm365, %v691, 0
    %820 = vmatpush.bf16.msra.mxu0 %v780
    %821 = vmatpush.bf16.msra.mxu0 %v778
    %822 = vmatpush.bf16.msra.mxu0 %v776
    %823 = vmatpush.bf16.msra.mxu0 %v774
    %824 = vmatpush.bf16.msra.mxu0 %v772
    %825 = vmatpush.bf16.msra.mxu0 %v770
    %826 = vmatpush.bf16.msra.mxu0 %v768
    %827 = vmatpush.bf16.msra.mxu0 %v766
    %828 = vmatmul.bf16.gmra.mxu0 %v684
    %v829 = vpop.f32.mrf.mxu0
    %v830 = vadd.f32 0.0, %v829
    %v831 = vpop.f32.mrf.mxu0
    %v832 = vadd.f32 0.0, %v831
    %833 = vmatmul.bf16.gmra.mxu0 %v689
    %v834 = vpop.f32.mrf.mxu0
    %v835 = vadd.f32 0.0, %v834
    %v836 = vpop.f32.mrf.mxu0
    %v837 = vadd.f32 0.0, %v836
    %838 = vdwg.mxu0
    %839 = vmatpush.bf16.msra.mxu0 0
    %840 = vmatpush.bf16.msra.mxu0 0
    %841 = vmatpush.bf16.msra.mxu0 0
    %842 = vmatpush.bf16.msra.mxu0 0
    %843 = vmatpush.bf16.msra.mxu0 %v788
    %844 = vmatpush.bf16.msra.mxu0 %v786
    %845 = vmatpush.bf16.msra.mxu0 %v784
    %846 = vmatpush.bf16.msra.mxu0 %v782
    %847 = vmatmul.bf16.gmra.mxu0 %v815
    %v848 = vpop.f32.mrf.mxu0
    %v849 = vadd.f32 %v830, %v848
    %v850 = vpop.f32.mrf.mxu0
    %v851 = vadd.f32 %v832, %v850
    %852 = vmatmul.bf16.gmra.mxu0 %v818
    %v853 = vpop.f32.mrf.mxu0
    %v854 = vadd.f32 %v835, %v853
    %v855 = vpop.f32.mrf.mxu0
    %v856 = vadd.f32 %v837, %v855
    %857 = vdwg.mxu0
    %858 = vmatpush.bf16.msra.mxu0 %v781
    %859 = vmatpush.bf16.msra.mxu0 %v779
    %860 = vmatpush.bf16.msra.mxu0 %v777
    %861 = vmatpush.bf16.msra.mxu0 %v775
    %862 = vmatpush.bf16.msra.mxu0 %v773
    %863 = vmatpush.bf16.msra.mxu0 %v771
    %864 = vmatpush.bf16.msra.mxu0 %v769
    %865 = vmatpush.bf16.msra.mxu0 %v767
    %866 = vmatmul.bf16.gmra.mxu0 %v684
    %v867 = vpop.f32.mrf.mxu0
    %v868 = vadd.f32 0.0, %v867
    %v869 = vpop.f32.mrf.mxu0
    %v870 = vadd.f32 0.0, %v869
    %871 = vmatmul.bf16.gmra.mxu0 %v689
    %v872 = vpop.f32.mrf.mxu0
    %v873 = vadd.f32 0.0, %v872
    %v874 = vpop.f32.mrf.mxu0
    %v875 = vadd.f32 0.0, %v874
    %876 = vdwg.mxu0
    %877 = vmatpush.bf16.msra.mxu0 0
    %878 = vmatpush.bf16.msra.mxu0 0
    %879 = vmatpush.bf16.msra.mxu0 0
    %880 = vmatpush.bf16.msra.mxu0 0
    %881 = vmatpush.bf16.msra.mxu0 %v789
    %882 = vmatpush.bf16.msra.mxu0 %v787
    %883 = vmatpush.bf16.msra.mxu0 %v785
    %884 = vmatpush.bf16.msra.mxu0 %v783
    %885 = vmatmul.bf16.gmra.mxu0 %v815
    %v886 = vpop.f32.mrf.mxu0
    %v887 = vadd.f32 %v868, %v886
    %v888 = vpop.f32.mrf.mxu0
    %v889 = vadd.f32 %v870, %v888
    %890 = vmatmul.bf16.gmra.mxu0 %v818
    %v891 = vpop.f32.mrf.mxu0
    %v892 = vadd.f32 %v873, %v891
    %v893 = vpop.f32.mrf.mxu0
    %v894 = vadd.f32 %v875, %v893
    %895 = vdwg.mxu0
    %v896 = vadd.f32 %v601, %v849
    %v897 = vadd.f32 %v639, %v887
    %v898 = vadd.f32 %v603, %v851
    %v899 = vadd.f32 %v641, %v889
    %v900 = vadd.f32 %v606, %v854
    %v901 = vadd.f32 %v644, %v892
    %v902 = vadd.f32 %v608, %v856
    %v903 = vadd.f32 %v646, %v894
    %s904 = scalar_lea.vmem [#allocation2], 576
    %v905 = vld [vmem:[%s904] sm:$0xff]
    %v906 = vld [vmem:[%s904 + $0x8] sm:$0xff]
    %v907 = vld [vmem:[%s904 + $0x10] sm:$0xff]
    %v908 = vld [vmem:[%s904 + $0x18] sm:$0xff]
    %v909 = vld [vmem:[%s904 + $0x20] sm:$0xff]
    %v910 = vld [vmem:[%s904 + $0x28] sm:$0xff]
    %v911 = vld [vmem:[%s904 + $0x30] sm:$0xff]
    %v912 = vld [vmem:[%s904 + $0x38] sm:$0xff]
    %v913 = vld [vmem:[%s904 + $0x40] sm:$0xff]
    %v914 = vld [vmem:[%s904 + $0x48] sm:$0xff]
    %v915 = vld [vmem:[%s904 + $0x50] sm:$0xff]
    %v916 = vld [vmem:[%s904 + $0x58] sm:$0xff]
    %v917 = vld [vmem:[%s904 + $0x60] sm:$0xff]
    %v918 = vld [vmem:[%s904 + $0x68] sm:$0xff]
    %v919 = vld [vmem:[%s904 + $0x70] sm:$0xff]
    %v920 = vld [vmem:[%s904 + $0x78] sm:$0xff]
    %v921 = vld [vmem:[%s904 + $0x80] sm:$0xff]
    %v922 = vld [vmem:[%s904 + $0x88] sm:$0xff]
    %v923 = vld [vmem:[%s904 + $0x90] sm:$0xff]
    %v924 = vld [vmem:[%s904 + $0x98] sm:$0xff]
    %v925 = vld [vmem:[%s904 + $0xa0] sm:$0xff]
    %v926 = vld [vmem:[%s904 + $0xa8] sm:$0xff]
    %v927 = vld [vmem:[%s904 + $0xb0] sm:$0xff]
    %v928 = vld [vmem:[%s904 + $0xb8] sm:$0xff]
    %vm929 = vsmask.f32 6400
    %v930 = vrot.slane %v214, 1
    %v931 = vrot.slane %v216, 2
    %v932 = vor.u32 %v930, %v931
    %v933 = vrot.slane %v237, 1
    %v934 = vrot.slane %v221, 2
    %v935 = vor.u32 %v933, %v934
    %v936 = vsel %vm929, %v932, %v935
    %v937 = vrot.slane %v226, 1
    %v938 = vrot.slane %v228, 2
    %v939 = vor.u32 %v937, %v938
    %v940 = vrot.slane %v240, 1
    %v941 = vrot.slane %v233, 2
    %v942 = vor.u32 %v940, %v941
    %v943 = vsel %vm929, %v939, %v942
    %v945 = vshrl.u32 %v648, 16
    %v947 = vrot.slane %v945, 1
    %v948 = vshll.u32 %v648, 16
    %v950 = vrot.slane %v948, 2
    %v951 = vor.u32 %v947, %v950
    %v952 = vsel %vm929, %v935, %v951
    %v954 = vshrl.u32 %v649, 16
    %v956 = vrot.slane %v954, 1
    %v957 = vshll.u32 %v649, 16
    %v959 = vrot.slane %v957, 2
    %v960 = vor.u32 %v956, %v959
    %v961 = vsel %vm929, %v942, %v960
    %v988 = vunpack.c.l.b16 %v905
    %v989 = vunpack.c.h.b16 %v905
    %v990 = vunpack.c.l.b16 %v906
    %v991 = vunpack.c.h.b16 %v906
    %v992 = vunpack.c.l.b16 %v907
    %v993 = vunpack.c.h.b16 %v907
    %v994 = vunpack.c.l.b16 %v908
    %v995 = vunpack.c.h.b16 %v908
    %v996 = vunpack.c.l.b16 %v909
    %v997 = vunpack.c.h.b16 %v909
    %v998 = vunpack.c.l.b16 %v910
    %v999 = vunpack.c.h.b16 %v910
    %v1000 = vunpack.c.l.b16 %v911
    %v1001 = vunpack.c.h.b16 %v911
    %v1002 = vunpack.c.l.b16 %v912
    %v1003 = vunpack.c.h.b16 %v912
    %v1004 = vunpack.c.l.b16 %v913
    %v1005 = vunpack.c.h.b16 %v913
    %v1006 = vunpack.c.l.b16 %v914
    %v1007 = vunpack.c.h.b16 %v914
    %v1008 = vunpack.c.l.b16 %v915
    %v1009 = vunpack.c.h.b16 %v915
    %v1010 = vunpack.c.l.b16 %v916
    %v1011 = vunpack.c.h.b16 %v916
    %v1012 = vunpack.c.l.b16 %v917
    %v1013 = vunpack.c.h.b16 %v917
    %v1014 = vunpack.c.l.b16 %v918
    %v1015 = vunpack.c.h.b16 %v918
    %v1016 = vunpack.c.l.b16 %v919
    %v1017 = vunpack.c.h.b16 %v919
    %v1018 = vunpack.c.l.b16 %v920
    %v1019 = vunpack.c.h.b16 %v920
    %v1020 = vunpack.c.l.b16 %v921
    %v1021 = vunpack.c.h.b16 %v921
    %v1022 = vunpack.c.l.b16 %v922
    %v1023 = vunpack.c.h.b16 %v922
    %v1024 = vunpack.c.l.b16 %v923
    %v1025 = vunpack.c.h.b16 %v923
    %v1026 = vunpack.c.l.b16 %v924
    %v1027 = vunpack.c.h.b16 %v924
    %v1028 = vunpack.c.l.b16 %v925
    %v1029 = vunpack.c.h.b16 %v925
    %v1030 = vunpack.c.l.b16 %v926
    %v1031 = vunpack.c.h.b16 %v926
    %v1032 = vunpack.c.l.b16 %v927
    %v1033 = vunpack.c.h.b16 %v927
    %v1034 = vunpack.c.l.b16 %v928
    %v1035 = vunpack.c.h.b16 %v928
    %v1036 = vpack.c.b16 %v990, %v988
    %v1037 = vpack.c.b16 %v991, %v989
    %v1038 = vpack.c.b16 %v994, %v992
    %v1039 = vpack.c.b16 %v995, %v993
    %v1040 = vpack.c.b16 %v998, %v996
    %v1041 = vpack.c.b16 %v999, %v997
    %v1042 = vpack.c.b16 %v1002, %v1000
    %v1043 = vpack.c.b16 %v1003, %v1001
    %v1044 = vpack.c.b16 %v1006, %v1004
    %v1045 = vpack.c.b16 %v1007, %v1005
    %v1046 = vpack.c.b16 %v1010, %v1008
    %v1047 = vpack.c.b16 %v1011, %v1009
    %v1048 = vpack.c.b16 %v1014, %v1012
    %v1049 = vpack.c.b16 %v1015, %v1013
    %v1050 = vpack.c.b16 %v1018, %v1016
    %v1051 = vpack.c.b16 %v1019, %v1017
    %v1052 = vpack.c.b16 %v1022, %v1020
    %v1053 = vpack.c.b16 %v1023, %v1021
    %v1054 = vpack.c.b16 %v1026, %v1024
    %v1055 = vpack.c.b16 %v1027, %v1025
    %v1056 = vpack.c.b16 %v1030, %v1028
    %v1057 = vpack.c.b16 %v1031, %v1029
    %v1058 = vpack.c.b16 %v1034, %v1032
    %v1059 = vpack.c.b16 %v1035, %v1033
    %v1085 = vsel %vm365, %v943, 0
    %v1088 = vsel %vm365, %v961, 0
    %1090 = vmatpush.bf16.msra.mxu0 %v1050
    %1091 = vmatpush.bf16.msra.mxu0 %v1048
    %1092 = vmatpush.bf16.msra.mxu0 %v1046
    %1093 = vmatpush.bf16.msra.mxu0 %v1044
    %1094 = vmatpush.bf16.msra.mxu0 %v1042
    %1095 = vmatpush.bf16.msra.mxu0 %v1040
    %1096 = vmatpush.bf16.msra.mxu0 %v1038
    %1097 = vmatpush.bf16.msra.mxu0 %v1036
    %1098 = vmatmul.bf16.gmra.mxu0 %v936
    %v1099 = vpop.f32.mrf.mxu0
    %v1100 = vadd.f32 0.0, %v1099
    %v1101 = vpop.f32.mrf.mxu0
    %v1102 = vadd.f32 0.0, %v1101
    %1103 = vmatmul.bf16.gmra.mxu0 %v952
    %v1104 = vpop.f32.mrf.mxu0
    %v1105 = vadd.f32 0.0, %v1104
    %v1106 = vpop.f32.mrf.mxu0
    %v1107 = vadd.f32 0.0, %v1106
    %1108 = vdwg.mxu0
    %1109 = vmatpush.bf16.msra.mxu0 0
    %1110 = vmatpush.bf16.msra.mxu0 0
    %1111 = vmatpush.bf16.msra.mxu0 0
    %1112 = vmatpush.bf16.msra.mxu0 0
    %1113 = vmatpush.bf16.msra.mxu0 %v1058
    %1114 = vmatpush.bf16.msra.mxu0 %v1056
    %1115 = vmatpush.bf16.msra.mxu0 %v1054
    %1116 = vmatpush.bf16.msra.mxu0 %v1052
    %1117 = vmatmul.bf16.gmra.mxu0 %v1085
    %v1118 = vpop.f32.mrf.mxu0
    %v1119 = vadd.f32 %v1100, %v1118
    %v1120 = vpop.f32.mrf.mxu0
    %v1121 = vadd.f32 %v1102, %v1120
    %1122 = vmatmul.bf16.gmra.mxu0 %v1088
    %v1123 = vpop.f32.mrf.mxu0
    %v1124 = vadd.f32 %v1105, %v1123
    %v1125 = vpop.f32.mrf.mxu0
    %v1126 = vadd.f32 %v1107, %v1125
    %1127 = vdwg.mxu0
    %1128 = vmatpush.bf16.msra.mxu0 %v1051
    %1129 = vmatpush.bf16.msra.mxu0 %v1049
    %1130 = vmatpush.bf16.msra.mxu0 %v1047
    %1131 = vmatpush.bf16.msra.mxu0 %v1045
    %1132 = vmatpush.bf16.msra.mxu0 %v1043
    %1133 = vmatpush.bf16.msra.mxu0 %v1041
    %1134 = vmatpush.bf16.msra.mxu0 %v1039
    %1135 = vmatpush.bf16.msra.mxu0 %v1037
    %1136 = vmatmul.bf16.gmra.mxu0 %v936
    %v1137 = vpop.f32.mrf.mxu0
    %v1138 = vadd.f32 0.0, %v1137
    %v1139 = vpop.f32.mrf.mxu0
    %v1140 = vadd.f32 0.0, %v1139
    %1141 = vmatmul.bf16.gmra.mxu0 %v952
    %v1142 = vpop.f32.mrf.mxu0
    %v1143 = vadd.f32 0.0, %v1142
    %v1144 = vpop.f32.mrf.mxu0
    %v1145 = vadd.f32 0.0, %v1144
    %1146 = vdwg.mxu0
    %1147 = vmatpush.bf16.msra.mxu0 0
    %1148 = vmatpush.bf16.msra.mxu0 0
    %1149 = vmatpush.bf16.msra.mxu0 0
    %1150 = vmatpush.bf16.msra.mxu0 0
    %1151 = vmatpush.bf16.msra.mxu0 %v1059
    %1152 = vmatpush.bf16.msra.mxu0 %v1057
    %1153 = vmatpush.bf16.msra.mxu0 %v1055
    %1154 = vmatpush.bf16.msra.mxu0 %v1053
    %1155 = vmatmul.bf16.gmra.mxu0 %v1085
    %v1156 = vpop.f32.mrf.mxu0
    %v1157 = vadd.f32 %v1138, %v1156
    %v1158 = vpop.f32.mrf.mxu0
    %v1159 = vadd.f32 %v1140, %v1158
    %1160 = vmatmul.bf16.gmra.mxu0 %v1088
    %v1161 = vpop.f32.mrf.mxu0
    %v1162 = vadd.f32 %v1143, %v1161
    %v1163 = vpop.f32.mrf.mxu0
    %v1164 = vadd.f32 %v1145, %v1163
    %1165 = vdwg.mxu0
    %v1166 = vadd.f32 %v896, %v1119
    %v1167 = vadd.f32 %v897, %v1157
    %v1168 = vadd.f32 %v898, %v1121
    %v1169 = vadd.f32 %v899, %v1159
    %v1170 = vadd.f32 %v900, %v1124
    %v1171 = vadd.f32 %v901, %v1162
    %v1172 = vadd.f32 %v902, %v1126
    %v1173 = vadd.f32 %v903, %v1164
    %s1174 = scalar_lea.vmem [#allocation2], 768
    %v1175 = vld [vmem:[%s1174] sm:$0xff]
    %v1176 = vld [vmem:[%s1174 + $0x8] sm:$0xff]
    %v1177 = vld [vmem:[%s1174 + $0x10] sm:$0xff]
    %v1178 = vld [vmem:[%s1174 + $0x18] sm:$0xff]
    %v1179 = vld [vmem:[%s1174 + $0x20] sm:$0xff]
    %v1180 = vld [vmem:[%s1174 + $0x28] sm:$0xff]
    %v1181 = vld [vmem:[%s1174 + $0x30] sm:$0xff]
    %v1182 = vld [vmem:[%s1174 + $0x38] sm:$0xff]
    %v1183 = vld [vmem:[%s1174 + $0x40] sm:$0xff]
    %v1184 = vld [vmem:[%s1174 + $0x48] sm:$0xff]
    %v1185 = vld [vmem:[%s1174 + $0x50] sm:$0xff]
    %v1186 = vld [vmem:[%s1174 + $0x58] sm:$0xff]
    %v1187 = vld [vmem:[%s1174 + $0x60] sm:$0xff]
    %v1188 = vld [vmem:[%s1174 + $0x68] sm:$0xff]
    %v1189 = vld [vmem:[%s1174 + $0x70] sm:$0xff]
    %v1190 = vld [vmem:[%s1174 + $0x78] sm:$0xff]
    %v1191 = vld [vmem:[%s1174 + $0x80] sm:$0xff]
    %v1192 = vld [vmem:[%s1174 + $0x88] sm:$0xff]
    %v1193 = vld [vmem:[%s1174 + $0x90] sm:$0xff]
    %v1194 = vld [vmem:[%s1174 + $0x98] sm:$0xff]
    %v1195 = vld [vmem:[%s1174 + $0xa0] sm:$0xff]
    %v1196 = vld [vmem:[%s1174 + $0xa8] sm:$0xff]
    %v1197 = vld [vmem:[%s1174 + $0xb0] sm:$0xff]
    %v1198 = vld [vmem:[%s1174 + $0xb8] sm:$0xff]
    %vm1199 = vcmask 1045504
    %v1200 = vrot.slane %v159, 2
    %v1201 = vrot.slane %v161, 2
    %v1202 = vsel %vm1199, %v1200, %v1201
    %v1203 = vrot.slane %v160, 2
    %v1204 = vrot.slane %v162, 2
    %v1205 = vsel %vm1199, %v1203, %v1204
    %v1206 = vrot.slane %v648, 2
    %v1207 = vsel %vm1199, %v1201, %v1206
    %v1208 = vrot.slane %v649, 2
    %v1209 = vsel %vm1199, %v1204, %v1208
    %v1236 = vunpack.c.l.b16 %v1175
    %v1237 = vunpack.c.h.b16 %v1175
    %v1238 = vunpack.c.l.b16 %v1176
    %v1239 = vunpack.c.h.b16 %v1176
    %v1240 = vunpack.c.l.b16 %v1177
    %v1241 = vunpack.c.h.b16 %v1177
    %v1242 = vunpack.c.l.b16 %v1178
    %v1243 = vunpack.c.h.b16 %v1178
    %v1244 = vunpack.c.l.b16 %v1179
    %v1245 = vunpack.c.h.b16 %v1179
    %v1246 = vunpack.c.l.b16 %v1180
    %v1247 = vunpack.c.h.b16 %v1180
    %v1248 = vunpack.c.l.b16 %v1181
    %v1249 = vunpack.c.h.b16 %v1181
    %v1250 = vunpack.c.l.b16 %v1182
    %v1251 = vunpack.c.h.b16 %v1182
    %v1252 = vunpack.c.l.b16 %v1183
    %v1253 = vunpack.c.h.b16 %v1183
    %v1254 = vunpack.c.l.b16 %v1184
    %v1255 = vunpack.c.h.b16 %v1184
    %v1256 = vunpack.c.l.b16 %v1185
    %v1257 = vunpack.c.h.b16 %v1185
    %v1258 = vunpack.c.l.b16 %v1186
    %v1259 = vunpack.c.h.b16 %v1186
    %v1260 = vunpack.c.l.b16 %v1187
    %v1261 = vunpack.c.h.b16 %v1187
    %v1262 = vunpack.c.l.b16 %v1188
    %v1263 = vunpack.c.h.b16 %v1188
    %v1264 = vunpack.c.l.b16 %v1189
    %v1265 = vunpack.c.h.b16 %v1189
    %v1266 = vunpack.c.l.b16 %v1190
    %v1267 = vunpack.c.h.b16 %v1190
    %v1268 = vunpack.c.l.b16 %v1191
    %v1269 = vunpack.c.h.b16 %v1191
    %v1270 = vunpack.c.l.b16 %v1192
    %v1271 = vunpack.c.h.b16 %v1192
    %v1272 = vunpack.c.l.b16 %v1193
    %v1273 = vunpack.c.h.b16 %v1193
    %v1274 = vunpack.c.l.b16 %v1194
    %v1275 = vunpack.c.h.b16 %v1194
    %v1276 = vunpack.c.l.b16 %v1195
    %v1277 = vunpack.c.h.b16 %v1195
    %v1278 = vunpack.c.l.b16 %v1196
    %v1279 = vunpack.c.h.b16 %v1196
    %v1280 = vunpack.c.l.b16 %v1197
    %v1281 = vunpack.c.h.b16 %v1197
    %v1282 = vunpack.c.l.b16 %v1198
    %v1283 = vunpack.c.h.b16 %v1198
    %v1284 = vpack.c.b16 %v1238, %v1236
    %v1285 = vpack.c.b16 %v1239, %v1237
    %v1286 = vpack.c.b16 %v1242, %v1240
    %v1287 = vpack.c.b16 %v1243, %v1241
    %v1288 = vpack.c.b16 %v1246, %v1244
    %v1289 = vpack.c.b16 %v1247, %v1245
    %v1290 = vpack.c.b16 %v1250, %v1248
    %v1291 = vpack.c.b16 %v1251, %v1249
    %v1292 = vpack.c.b16 %v1254, %v1252
    %v1293 = vpack.c.b16 %v1255, %v1253
    %v1294 = vpack.c.b16 %v1258, %v1256
    %v1295 = vpack.c.b16 %v1259, %v1257
    %v1296 = vpack.c.b16 %v1262, %v1260
    %v1297 = vpack.c.b16 %v1263, %v1261
    %v1298 = vpack.c.b16 %v1266, %v1264
    %v1299 = vpack.c.b16 %v1267, %v1265
    %v1300 = vpack.c.b16 %v1270, %v1268
    %v1301 = vpack.c.b16 %v1271, %v1269
    %v1302 = vpack.c.b16 %v1274, %v1272
    %v1303 = vpack.c.b16 %v1275, %v1273
    %v1304 = vpack.c.b16 %v1278, %v1276
    %v1305 = vpack.c.b16 %v1279, %v1277
    %v1306 = vpack.c.b16 %v1282, %v1280
    %v1307 = vpack.c.b16 %v1283, %v1281
    %v1333 = vsel %vm365, %v1205, 0
    %v1336 = vsel %vm365, %v1209, 0
    %1338 = vmatpush.bf16.msra.mxu0 %v1298
    %1339 = vmatpush.bf16.msra.mxu0 %v1296
    %1340 = vmatpush.bf16.msra.mxu0 %v1294
    %1341 = vmatpush.bf16.msra.mxu0 %v1292
    %1342 = vmatpush.bf16.msra.mxu0 %v1290
    %1343 = vmatpush.bf16.msra.mxu0 %v1288
    %1344 = vmatpush.bf16.msra.mxu0 %v1286
    %1345 = vmatpush.bf16.msra.mxu0 %v1284
    %1346 = vmatmul.bf16.gmra.mxu0 %v1202
    %v1347 = vpop.f32.mrf.mxu0
    %v1348 = vadd.f32 0.0, %v1347
    %v1349 = vpop.f32.mrf.mxu0
    %v1350 = vadd.f32 0.0, %v1349
    %1351 = vmatmul.bf16.gmra.mxu0 %v1207
    %v1352 = vpop.f32.mrf.mxu0
    %v1353 = vadd.f32 0.0, %v1352
    %v1354 = vpop.f32.mrf.mxu0
    %v1355 = vadd.f32 0.0, %v1354
    %1356 = vdwg.mxu0
    %1357 = vmatpush.bf16.msra.mxu0 0
    %1358 = vmatpush.bf16.msra.mxu0 0
    %1359 = vmatpush.bf16.msra.mxu0 0
    %1360 = vmatpush.bf16.msra.mxu0 0
    %1361 = vmatpush.bf16.msra.mxu0 %v1306
    %1362 = vmatpush.bf16.msra.mxu0 %v1304
    %1363 = vmatpush.bf16.msra.mxu0 %v1302
    %1364 = vmatpush.bf16.msra.mxu0 %v1300
    %1365 = vmatmul.bf16.gmra.mxu0 %v1333
    %v1366 = vpop.f32.mrf.mxu0
    %v1367 = vadd.f32 %v1348, %v1366
    %v1368 = vpop.f32.mrf.mxu0
    %v1369 = vadd.f32 %v1350, %v1368
    %1370 = vmatmul.bf16.gmra.mxu0 %v1336
    %v1371 = vpop.f32.mrf.mxu0
    %v1372 = vadd.f32 %v1353, %v1371
    %v1373 = vpop.f32.mrf.mxu0
    %v1374 = vadd.f32 %v1355, %v1373
    %1375 = vdwg.mxu0
    %1376 = vmatpush.bf16.msra.mxu0 %v1299
    %1377 = vmatpush.bf16.msra.mxu0 %v1297
    %1378 = vmatpush.bf16.msra.mxu0 %v1295
    %1379 = vmatpush.bf16.msra.mxu0 %v1293
    %1380 = vmatpush.bf16.msra.mxu0 %v1291
    %1381 = vmatpush.bf16.msra.mxu0 %v1289
    %1382 = vmatpush.bf16.msra.mxu0 %v1287
    %1383 = vmatpush.bf16.msra.mxu0 %v1285
    %1384 = vmatmul.bf16.gmra.mxu0 %v1202
    %v1385 = vpop.f32.mrf.mxu0
    %v1386 = vadd.f32 0.0, %v1385
    %v1387 = vpop.f32.mrf.mxu0
    %v1388 = vadd.f32 0.0, %v1387
    %1389 = vmatmul.bf16.gmra.mxu0 %v1207
    %v1390 = vpop.f32.mrf.mxu0
    %v1391 = vadd.f32 0.0, %v1390
    %v1392 = vpop.f32.mrf.mxu0
    %v1393 = vadd.f32 0.0, %v1392
    %1394 = vdwg.mxu0
    %1395 = vmatpush.bf16.msra.mxu0 0
    %1396 = vmatpush.bf16.msra.mxu0 0
    %1397 = vmatpush.bf16.msra.mxu0 0
    %1398 = vmatpush.bf16.msra.mxu0 0
    %1399 = vmatpush.bf16.msra.mxu0 %v1307
    %1400 = vmatpush.bf16.msra.mxu0 %v1305
    %1401 = vmatpush.bf16.msra.mxu0 %v1303
    %1402 = vmatpush.bf16.msra.mxu0 %v1301
    %1403 = vmatmul.bf16.gmra.mxu0 %v1333
    %v1404 = vpop.f32.mrf.mxu0
    %v1405 = vadd.f32 %v1386, %v1404
    %v1406 = vpop.f32.mrf.mxu0
    %v1407 = vadd.f32 %v1388, %v1406
    %1408 = vmatmul.bf16.gmra.mxu0 %v1336
    %v1409 = vpop.f32.mrf.mxu0
    %v1410 = vadd.f32 %v1391, %v1409
    %v1411 = vpop.f32.mrf.mxu0
    %v1412 = vadd.f32 %v1393, %v1411
    %1413 = vdwg.mxu0
    %v1414 = vadd.f32 %v1166, %v1367
    %v1415 = vadd.f32 %v1167, %v1405
    %v1416 = vadd.f32 %v1168, %v1369
    %v1417 = vadd.f32 %v1169, %v1407
    %v1418 = vadd.f32 %v1170, %v1372
    %v1419 = vadd.f32 %v1171, %v1410
    %v1420 = vadd.f32 %v1172, %v1374
    %v1421 = vadd.f32 %v1173, %v1412
    %s1422 = scalar_lea.vmem [#allocation2], 960
    %v1423 = vld [vmem:[%s1422] sm:$0xff]
    %v1424 = vld [vmem:[%s1422 + $0x8] sm:$0xff]
    %v1425 = vld [vmem:[%s1422 + $0x10] sm:$0xff]
    %v1426 = vld [vmem:[%s1422 + $0x18] sm:$0xff]
    %v1427 = vld [vmem:[%s1422 + $0x20] sm:$0xff]
    %v1428 = vld [vmem:[%s1422 + $0x28] sm:$0xff]
    %v1429 = vld [vmem:[%s1422 + $0x30] sm:$0xff]
    %v1430 = vld [vmem:[%s1422 + $0x38] sm:$0xff]
    %v1431 = vld [vmem:[%s1422 + $0x40] sm:$0xff]
    %v1432 = vld [vmem:[%s1422 + $0x48] sm:$0xff]
    %v1433 = vld [vmem:[%s1422 + $0x50] sm:$0xff]
    %v1434 = vld [vmem:[%s1422 + $0x58] sm:$0xff]
    %v1435 = vld [vmem:[%s1422 + $0x60] sm:$0xff]
    %v1436 = vld [vmem:[%s1422 + $0x68] sm:$0xff]
    %v1437 = vld [vmem:[%s1422 + $0x70] sm:$0xff]
    %v1438 = vld [vmem:[%s1422 + $0x78] sm:$0xff]
    %v1439 = vld [vmem:[%s1422 + $0x80] sm:$0xff]
    %v1440 = vld [vmem:[%s1422 + $0x88] sm:$0xff]
    %v1441 = vld [vmem:[%s1422 + $0x90] sm:$0xff]
    %v1442 = vld [vmem:[%s1422 + $0x98] sm:$0xff]
    %v1443 = vld [vmem:[%s1422 + $0xa0] sm:$0xff]
    %v1444 = vld [vmem:[%s1422 + $0xa8] sm:$0xff]
    %v1445 = vld [vmem:[%s1422 + $0xb0] sm:$0xff]
    %v1446 = vld [vmem:[%s1422 + $0xb8] sm:$0xff]
    %vm1447 = vsmask.f32 5376
    %v1448 = vrot.slane %v214, 2
    %v1449 = vrot.slane %v216, 3
    %v1450 = vor.u32 %v1448, %v1449
    %v1451 = vrot.slane %v237, 2
    %v1452 = vrot.slane %v221, 3
    %v1453 = vor.u32 %v1451, %v1452
    %v1454 = vsel %vm1447, %v1450, %v1453
    %v1455 = vrot.slane %v226, 2
    %v1456 = vrot.slane %v228, 3
    %v1457 = vor.u32 %v1455, %v1456
    %v1458 = vrot.slane %v240, 2
    %v1459 = vrot.slane %v233, 3
    %v1460 = vor.u32 %v1458, %v1459
    %v1461 = vsel %vm1447, %v1457, %v1460
    %v1462 = vrot.slane %v945, 2
    %v1463 = vrot.slane %v948, 3
    %v1464 = vor.u32 %v1462, %v1463
    %v1465 = vsel %vm1447, %v1453, %v1464
    %v1466 = vrot.slane %v954, 2
    %v1467 = vrot.slane %v957, 3
    %v1468 = vor.u32 %v1466, %v1467
    %v1469 = vsel %vm1447, %v1460, %v1468
    %v1496 = vunpack.c.l.b16 %v1423
    %v1497 = vunpack.c.h.b16 %v1423
    %v1498 = vunpack.c.l.b16 %v1424
    %v1499 = vunpack.c.h.b16 %v1424
    %v1500 = vunpack.c.l.b16 %v1425
    %v1501 = vunpack.c.h.b16 %v1425
    %v1502 = vunpack.c.l.b16 %v1426
    %v1503 = vunpack.c.h.b16 %v1426
    %v1504 = vunpack.c.l.b16 %v1427
    %v1505 = vunpack.c.h.b16 %v1427
    %v1506 = vunpack.c.l.b16 %v1428
    %v1507 = vunpack.c.h.b16 %v1428
    %v1508 = vunpack.c.l.b16 %v1429
    %v1509 = vunpack.c.h.b16 %v1429
    %v1510 = vunpack.c.l.b16 %v1430
    %v1511 = vunpack.c.h.b16 %v1430
    %v1512 = vunpack.c.l.b16 %v1431
    %v1513 = vunpack.c.h.b16 %v1431
    %v1514 = vunpack.c.l.b16 %v1432
    %v1515 = vunpack.c.h.b16 %v1432
    %v1516 = vunpack.c.l.b16 %v1433
    %v1517 = vunpack.c.h.b16 %v1433
    %v1518 = vunpack.c.l.b16 %v1434
    %v1519 = vunpack.c.h.b16 %v1434
    %v1520 = vunpack.c.l.b16 %v1435
    %v1521 = vunpack.c.h.b16 %v1435
    %v1522 = vunpack.c.l.b16 %v1436
    %v1523 = vunpack.c.h.b16 %v1436
    %v1524 = vunpack.c.l.b16 %v1437
    %v1525 = vunpack.c.h.b16 %v1437
    %v1526 = vunpack.c.l.b16 %v1438
    %v1527 = vunpack.c.h.b16 %v1438
    %v1528 = vunpack.c.l.b16 %v1439
    %v1529 = vunpack.c.h.b16 %v1439
    %v1530 = vunpack.c.l.b16 %v1440
    %v1531 = vunpack.c.h.b16 %v1440
    %v1532 = vunpack.c.l.b16 %v1441
    %v1533 = vunpack.c.h.b16 %v1441
    %v1534 = vunpack.c.l.b16 %v1442
    %v1535 = vunpack.c.h.b16 %v1442
    %v1536 = vunpack.c.l.b16 %v1443
    %v1537 = vunpack.c.h.b16 %v1443
    %v1538 = vunpack.c.l.b16 %v1444
    %v1539 = vunpack.c.h.b16 %v1444
    %v1540 = vunpack.c.l.b16 %v1445
    %v1541 = vunpack.c.h.b16 %v1445
    %v1542 = vunpack.c.l.b16 %v1446
    %v1543 = vunpack.c.h.b16 %v1446
    %v1544 = vpack.c.b16 %v1498, %v1496
    %v1545 = vpack.c.b16 %v1499, %v1497
    %v1546 = vpack.c.b16 %v1502, %v1500
    %v1547 = vpack.c.b16 %v1503, %v1501
    %v1548 = vpack.c.b16 %v1506, %v1504
    %v1549 = vpack.c.b16 %v1507, %v1505
    %v1550 = vpack.c.b16 %v1510, %v1508
    %v1551 = vpack.c.b16 %v1511, %v1509
    %v1552 = vpack.c.b16 %v1514, %v1512
    %v1553 = vpack.c.b16 %v1515, %v1513
    %v1554 = vpack.c.b16 %v1518, %v1516
    %v1555 = vpack.c.b16 %v1519, %v1517
    %v1556 = vpack.c.b16 %v1522, %v1520
    %v1557 = vpack.c.b16 %v1523, %v1521
    %v1558 = vpack.c.b16 %v1526, %v1524
    %v1559 = vpack.c.b16 %v1527, %v1525
    %v1560 = vpack.c.b16 %v1530, %v1528
    %v1561 = vpack.c.b16 %v1531, %v1529
    %v1562 = vpack.c.b16 %v1534, %v1532
    %v1563 = vpack.c.b16 %v1535, %v1533
    %v1564 = vpack.c.b16 %v1538, %v1536
    %v1565 = vpack.c.b16 %v1539, %v1537
    %v1566 = vpack.c.b16 %v1542, %v1540
    %v1567 = vpack.c.b16 %v1543, %v1541
    %v1593 = vsel %vm365, %v1461, 0
    %v1596 = vsel %vm365, %v1469, 0
    %1598 = vmatpush.bf16.msra.mxu0 %v1558
    %1599 = vmatpush.bf16.msra.mxu0 %v1556
    %1600 = vmatpush.bf16.msra.mxu0 %v1554
    %1601 = vmatpush.bf16.msra.mxu0 %v1552
    %1602 = vmatpush.bf16.msra.mxu0 %v1550
    %1603 = vmatpush.bf16.msra.mxu0 %v1548
    %1604 = vmatpush.bf16.msra.mxu0 %v1546
    %1605 = vmatpush.bf16.msra.mxu0 %v1544
    %1606 = vmatmul.bf16.gmra.mxu0 %v1454
    %v1607 = vpop.f32.mrf.mxu0
    %v1608 = vadd.f32 0.0, %v1607
    %v1609 = vpop.f32.mrf.mxu0
    %v1610 = vadd.f32 0.0, %v1609
    %1611 = vmatmul.bf16.gmra.mxu0 %v1465
    %v1612 = vpop.f32.mrf.mxu0
    %v1613 = vadd.f32 0.0, %v1612
    %v1614 = vpop.f32.mrf.mxu0
    %v1615 = vadd.f32 0.0, %v1614
    %1616 = vdwg.mxu0
    %1617 = vmatpush.bf16.msra.mxu0 0
    %1618 = vmatpush.bf16.msra.mxu0 0
    %1619 = vmatpush.bf16.msra.mxu0 0
    %1620 = vmatpush.bf16.msra.mxu0 0
    %1621 = vmatpush.bf16.msra.mxu0 %v1566
    %1622 = vmatpush.bf16.msra.mxu0 %v1564
    %1623 = vmatpush.bf16.msra.mxu0 %v1562
    %1624 = vmatpush.bf16.msra.mxu0 %v1560
    %1625 = vmatmul.bf16.gmra.mxu0 %v1593
    %v1626 = vpop.f32.mrf.mxu0
    %v1627 = vadd.f32 %v1608, %v1626
    %v1628 = vpop.f32.mrf.mxu0
    %v1629 = vadd.f32 %v1610, %v1628
    %1630 = vmatmul.bf16.gmra.mxu0 %v1596
    %v1631 = vpop.f32.mrf.mxu0
    %v1632 = vadd.f32 %v1613, %v1631
    %v1633 = vpop.f32.mrf.mxu0
    %v1634 = vadd.f32 %v1615, %v1633
    %1635 = vdwg.mxu0
    %1636 = vmatpush.bf16.msra.mxu0 %v1559
    %1637 = vmatpush.bf16.msra.mxu0 %v1557
    %1638 = vmatpush.bf16.msra.mxu0 %v1555
    %1639 = vmatpush.bf16.msra.mxu0 %v1553
    %1640 = vmatpush.bf16.msra.mxu0 %v1551
    %1641 = vmatpush.bf16.msra.mxu0 %v1549
    %1642 = vmatpush.bf16.msra.mxu0 %v1547
    %1643 = vmatpush.bf16.msra.mxu0 %v1545
    %1644 = vmatmul.bf16.gmra.mxu0 %v1454
    %v1645 = vpop.f32.mrf.mxu0
    %v1646 = vadd.f32 0.0, %v1645
    %v1647 = vpop.f32.mrf.mxu0
    %v1648 = vadd.f32 0.0, %v1647
    %1649 = vmatmul.bf16.gmra.mxu0 %v1465
    %v1650 = vpop.f32.mrf.mxu0
    %v1651 = vadd.f32 0.0, %v1650
    %v1652 = vpop.f32.mrf.mxu0
    %v1653 = vadd.f32 0.0, %v1652
    %1654 = vdwg.mxu0
    %1655 = vmatpush.bf16.msra.mxu0 0
    %1656 = vmatpush.bf16.msra.mxu0 0
    %1657 = vmatpush.bf16.msra.mxu0 0
    %1658 = vmatpush.bf16.msra.mxu0 0
    %1659 = vmatpush.bf16.msra.mxu0 %v1567
    %1660 = vmatpush.bf16.msra.mxu0 %v1565
    %1661 = vmatpush.bf16.msra.mxu0 %v1563
    %1662 = vmatpush.bf16.msra.mxu0 %v1561
    %1663 = vmatmul.bf16.gmra.mxu0 %v1593
    %v1664 = vpop.f32.mrf.mxu0
    %v1665 = vadd.f32 %v1646, %v1664
    %v1666 = vpop.f32.mrf.mxu0
    %v1667 = vadd.f32 %v1648, %v1666
    %1668 = vmatmul.bf16.gmra.mxu0 %v1596
    %v1669 = vpop.f32.mrf.mxu0
    %v1670 = vadd.f32 %v1651, %v1669
    %v1671 = vpop.f32.mrf.mxu0
    %v1672 = vadd.f32 %v1653, %v1671
    %1673 = vdwg.mxu0
    %v1674 = vadd.f32 %v1414, %v1627
    %v1675 = vadd.f32 %v1415, %v1665
    %v1676 = vadd.f32 %v1416, %v1629
    %v1677 = vadd.f32 %v1417, %v1667
    %v1678 = vadd.f32 %v1418, %v1632
    %v1679 = vadd.f32 %v1419, %v1670
    %v1680 = vadd.f32 %v1420, %v1634
    %v1681 = vadd.f32 %v1421, %v1672
    %s1682 = scalar_lea.vmem [#allocation2], 1152
    %v1683 = vld [vmem:[%s1682] sm:$0xff]
    %v1684 = vld [vmem:[%s1682 + $0x8] sm:$0xff]
    %v1685 = vld [vmem:[%s1682 + $0x10] sm:$0xff]
    %v1686 = vld [vmem:[%s1682 + $0x18] sm:$0xff]
    %v1687 = vld [vmem:[%s1682 + $0x20] sm:$0xff]
    %v1688 = vld [vmem:[%s1682 + $0x28] sm:$0xff]
    %v1689 = vld [vmem:[%s1682 + $0x30] sm:$0xff]
    %v1690 = vld [vmem:[%s1682 + $0x38] sm:$0xff]
    %v1691 = vld [vmem:[%s1682 + $0x40] sm:$0xff]
    %v1692 = vld [vmem:[%s1682 + $0x48] sm:$0xff]
    %v1693 = vld [vmem:[%s1682 + $0x50] sm:$0xff]
    %v1694 = vld [vmem:[%s1682 + $0x58] sm:$0xff]
    %v1695 = vld [vmem:[%s1682 + $0x60] sm:$0xff]
    %v1696 = vld [vmem:[%s1682 + $0x68] sm:$0xff]
    %v1697 = vld [vmem:[%s1682 + $0x70] sm:$0xff]
    %v1698 = vld [vmem:[%s1682 + $0x78] sm:$0xff]
    %v1699 = vld [vmem:[%s1682 + $0x80] sm:$0xff]
    %v1700 = vld [vmem:[%s1682 + $0x88] sm:$0xff]
    %v1701 = vld [vmem:[%s1682 + $0x90] sm:$0xff]
    %v1702 = vld [vmem:[%s1682 + $0x98] sm:$0xff]
    %v1703 = vld [vmem:[%s1682 + $0xa0] sm:$0xff]
    %v1704 = vld [vmem:[%s1682 + $0xa8] sm:$0xff]
    %v1705 = vld [vmem:[%s1682 + $0xb0] sm:$0xff]
    %v1706 = vld [vmem:[%s1682 + $0xb8] sm:$0xff]
    %vm1707 = vcmask 1044480
    %v1708 = vrot.slane %v159, 3
    %v1709 = vrot.slane %v161, 3
    %v1710 = vsel %vm1707, %v1708, %v1709
    %v1711 = vrot.slane %v160, 3
    %v1712 = vrot.slane %v162, 3
    %v1713 = vsel %vm1707, %v1711, %v1712
    %v1714 = vrot.slane %v648, 3
    %v1715 = vsel %vm1707, %v1709, %v1714
    %v1716 = vrot.slane %v649, 3
    %v1717 = vsel %vm1707, %v1712, %v1716
    %v1744 = vunpack.c.l.b16 %v1683
    %v1745 = vunpack.c.h.b16 %v1683
    %v1746 = vunpack.c.l.b16 %v1684
    %v1747 = vunpack.c.h.b16 %v1684
    %v1748 = vunpack.c.l.b16 %v1685
    %v1749 = vunpack.c.h.b16 %v1685
    %v1750 = vunpack.c.l.b16 %v1686
    %v1751 = vunpack.c.h.b16 %v1686
    %v1752 = vunpack.c.l.b16 %v1687
    %v1753 = vunpack.c.h.b16 %v1687
    %v1754 = vunpack.c.l.b16 %v1688
    %v1755 = vunpack.c.h.b16 %v1688
    %v1756 = vunpack.c.l.b16 %v1689
    %v1757 = vunpack.c.h.b16 %v1689
    %v1758 = vunpack.c.l.b16 %v1690
    %v1759 = vunpack.c.h.b16 %v1690
    %v1760 = vunpack.c.l.b16 %v1691
    %v1761 = vunpack.c.h.b16 %v1691
    %v1762 = vunpack.c.l.b16 %v1692
    %v1763 = vunpack.c.h.b16 %v1692
    %v1764 = vunpack.c.l.b16 %v1693
    %v1765 = vunpack.c.h.b16 %v1693
    %v1766 = vunpack.c.l.b16 %v1694
    %v1767 = vunpack.c.h.b16 %v1694
    %v1768 = vunpack.c.l.b16 %v1695
    %v1769 = vunpack.c.h.b16 %v1695
    %v1770 = vunpack.c.l.b16 %v1696
    %v1771 = vunpack.c.h.b16 %v1696
    %v1772 = vunpack.c.l.b16 %v1697
    %v1773 = vunpack.c.h.b16 %v1697
    %v1774 = vunpack.c.l.b16 %v1698
    %v1775 = vunpack.c.h.b16 %v1698
    %v1776 = vunpack.c.l.b16 %v1699
    %v1777 = vunpack.c.h.b16 %v1699
    %v1778 = vunpack.c.l.b16 %v1700
    %v1779 = vunpack.c.h.b16 %v1700
    %v1780 = vunpack.c.l.b16 %v1701
    %v1781 = vunpack.c.h.b16 %v1701
    %v1782 = vunpack.c.l.b16 %v1702
    %v1783 = vunpack.c.h.b16 %v1702
    %v1784 = vunpack.c.l.b16 %v1703
    %v1785 = vunpack.c.h.b16 %v1703
    %v1786 = vunpack.c.l.b16 %v1704
    %v1787 = vunpack.c.h.b16 %v1704
    %v1788 = vunpack.c.l.b16 %v1705
    %v1789 = vunpack.c.h.b16 %v1705
    %v1790 = vunpack.c.l.b16 %v1706
    %v1791 = vunpack.c.h.b16 %v1706
    %v1792 = vpack.c.b16 %v1746, %v1744
    %v1793 = vpack.c.b16 %v1747, %v1745
    %v1794 = vpack.c.b16 %v1750, %v1748
    %v1795 = vpack.c.b16 %v1751, %v1749
    %v1796 = vpack.c.b16 %v1754, %v1752
    %v1797 = vpack.c.b16 %v1755, %v1753
    %v1798 = vpack.c.b16 %v1758, %v1756
    %v1799 = vpack.c.b16 %v1759, %v1757
    %v1800 = vpack.c.b16 %v1762, %v1760
    %v1801 = vpack.c.b16 %v1763, %v1761
    %v1802 = vpack.c.b16 %v1766, %v1764
    %v1803 = vpack.c.b16 %v1767, %v1765
    %v1804 = vpack.c.b16 %v1770, %v1768
    %v1805 = vpack.c.b16 %v1771, %v1769
    %v1806 = vpack.c.b16 %v1774, %v1772
    %v1807 = vpack.c.b16 %v1775, %v1773
    %v1808 = vpack.c.b16 %v1778, %v1776
    %v1809 = vpack.c.b16 %v1779, %v1777
    %v1810 = vpack.c.b16 %v1782, %v1780
    %v1811 = vpack.c.b16 %v1783, %v1781
    %v1812 = vpack.c.b16 %v1786, %v1784
    %v1813 = vpack.c.b16 %v1787, %v1785
    %v1814 = vpack.c.b16 %v1790, %v1788
    %v1815 = vpack.c.b16 %v1791, %v1789
    %v1841 = vsel %vm365, %v1713, 0
    %v1844 = vsel %vm365, %v1717, 0
    %1846 = vmatpush.bf16.msra.mxu0 %v1806
    %1847 = vmatpush.bf16.msra.mxu0 %v1804
    %1848 = vmatpush.bf16.msra.mxu0 %v1802
    %1849 = vmatpush.bf16.msra.mxu0 %v1800
    %1850 = vmatpush.bf16.msra.mxu0 %v1798
    %1851 = vmatpush.bf16.msra.mxu0 %v1796
    %1852 = vmatpush.bf16.msra.mxu0 %v1794
    %1853 = vmatpush.bf16.msra.mxu0 %v1792
    %1854 = vmatmul.bf16.gmra.mxu0 %v1710
    %v1855 = vpop.f32.mrf.mxu0
    %v1856 = vadd.f32 0.0, %v1855
    %v1857 = vpop.f32.mrf.mxu0
    %v1858 = vadd.f32 0.0, %v1857
    %1859 = vmatmul.bf16.gmra.mxu0 %v1715
    %v1860 = vpop.f32.mrf.mxu0
    %v1861 = vadd.f32 0.0, %v1860
    %v1862 = vpop.f32.mrf.mxu0
    %v1863 = vadd.f32 0.0, %v1862
    %1864 = vdwg.mxu0
    %1865 = vmatpush.bf16.msra.mxu0 0
    %1866 = vmatpush.bf16.msra.mxu0 0
    %1867 = vmatpush.bf16.msra.mxu0 0
    %1868 = vmatpush.bf16.msra.mxu0 0
    %1869 = vmatpush.bf16.msra.mxu0 %v1814
    %1870 = vmatpush.bf16.msra.mxu0 %v1812
    %1871 = vmatpush.bf16.msra.mxu0 %v1810
    %1872 = vmatpush.bf16.msra.mxu0 %v1808
    %1873 = vmatmul.bf16.gmra.mxu0 %v1841
    %v1874 = vpop.f32.mrf.mxu0
    %v1875 = vadd.f32 %v1856, %v1874
    %v1876 = vpop.f32.mrf.mxu0
    %v1877 = vadd.f32 %v1858, %v1876
    %1878 = vmatmul.bf16.gmra.mxu0 %v1844
    %v1879 = vpop.f32.mrf.mxu0
    %v1880 = vadd.f32 %v1861, %v1879
    %v1881 = vpop.f32.mrf.mxu0
    %v1882 = vadd.f32 %v1863, %v1881
    %1883 = vdwg.mxu0
    %1884 = vmatpush.bf16.msra.mxu0 %v1807
    %1885 = vmatpush.bf16.msra.mxu0 %v1805
    %1886 = vmatpush.bf16.msra.mxu0 %v1803
    %1887 = vmatpush.bf16.msra.mxu0 %v1801
    %1888 = vmatpush.bf16.msra.mxu0 %v1799
    %1889 = vmatpush.bf16.msra.mxu0 %v1797
    %1890 = vmatpush.bf16.msra.mxu0 %v1795
    %1891 = vmatpush.bf16.msra.mxu0 %v1793
    %1892 = vmatmul.bf16.gmra.mxu0 %v1710
    %v1893 = vpop.f32.mrf.mxu0
    %v1894 = vadd.f32 0.0, %v1893
    %v1895 = vpop.f32.mrf.mxu0
    %v1896 = vadd.f32 0.0, %v1895
    %1897 = vmatmul.bf16.gmra.mxu0 %v1715
    %v1898 = vpop.f32.mrf.mxu0
    %v1899 = vadd.f32 0.0, %v1898
    %v1900 = vpop.f32.mrf.mxu0
    %v1901 = vadd.f32 0.0, %v1900
    %1902 = vdwg.mxu0
    %1903 = vmatpush.bf16.msra.mxu0 0
    %1904 = vmatpush.bf16.msra.mxu0 0
    %1905 = vmatpush.bf16.msra.mxu0 0
    %1906 = vmatpush.bf16.msra.mxu0 0
    %1907 = vmatpush.bf16.msra.mxu0 %v1815
    %1908 = vmatpush.bf16.msra.mxu0 %v1813
    %1909 = vmatpush.bf16.msra.mxu0 %v1811
    %1910 = vmatpush.bf16.msra.mxu0 %v1809
    %1911 = vmatmul.bf16.gmra.mxu0 %v1841
    %v1912 = vpop.f32.mrf.mxu0
    %v1913 = vadd.f32 %v1894, %v1912
    %v1914 = vpop.f32.mrf.mxu0
    %v1915 = vadd.f32 %v1896, %v1914
    %1916 = vmatmul.bf16.gmra.mxu0 %v1844
    %v1917 = vpop.f32.mrf.mxu0
    %v1918 = vadd.f32 %v1899, %v1917
    %v1919 = vpop.f32.mrf.mxu0
    %v1920 = vadd.f32 %v1901, %v1919
    %1921 = vdwg.mxu0
    %v1922 = vadd.f32 %v1674, %v1875
    %v1923 = vadd.f32 %v1675, %v1913
    %v1924 = vadd.f32 %v1676, %v1877
    %v1925 = vadd.f32 %v1677, %v1915
    %v1926 = vadd.f32 %v1678, %v1880
    %v1927 = vadd.f32 %v1679, %v1918
    %v1928 = vadd.f32 %v1680, %v1882
    %v1929 = vadd.f32 %v1681, %v1920
    %v1930 = vld [vmem:[%s4] sm:$0xff]
    %v1931 = vld [vmem:[%s4 + $0x8] sm:$0xff]
    %vm1932 = vcmask 252928
    %v1934 = vsel %vm1932, %v1930, 0
    %v1937 = vsel %vm1932, %v1931, 0
    %vm1939 = vcmask 1046528
    %v1941 = vsel %vm1939, %v1928, 0
    %v1944 = vsel %vm1939, %v1929, 0
    %1946 = vmatpush.msra.mxu0 0.0
    %1947 = vmatpush.msra.mxu0 0.0
    %1948 = vmatpush.msra.mxu0 0.0
    %1949 = vmatpush.msra.mxu0 0.0
    %1950 = vmatpush.msra.mxu0 0.0
    %1951 = vmatpush.msra.mxu0 0.0
    %1952 = vmatpush.msra.mxu0 0.0
    %1953 = vmatpush.msra.mxu0 0.0
    %1954 = vmatpush.msra.mxu0 0.0
    %1955 = vmatpush.msra.mxu0 0.0
    %1956 = vmatpush.msra.mxu0 0.0
    %1957 = vmatpush.msra.mxu0 0.0
    %1958 = vmatpush.msra.mxu0 %v1941
    %1959 = vmatpush.msra.mxu0 %v1926
    %1960 = vmatpush.msra.mxu0 %v1924
    %1961 = vmatpush.msra.mxu0 %v1922
    %1962 = vmatmul.f32.gmra.mxu0 %v1934
    %v1963 = vpop.f32.mrf.mxu0
    %v1964 = vadd.f32 0.0, %v1963
    %1965 = vmatmul.f32.gmra.mxu0 %v1937
    %v1966 = vpop.f32.mrf.mxu0
    %v1967 = vadd.f32 0.0, %v1966
    %1968 = vdwg.mxu0
    %1969 = vmatpush.msra.mxu0 0.0
    %1970 = vmatpush.msra.mxu0 0.0
    %1971 = vmatpush.msra.mxu0 0.0
    %1972 = vmatpush.msra.mxu0 0.0
    %1973 = vmatpush.msra.mxu0 0.0
    %1974 = vmatpush.msra.mxu0 0.0
    %1975 = vmatpush.msra.mxu0 0.0
    %1976 = vmatpush.msra.mxu0 0.0
    %1977 = vmatpush.msra.mxu0 0.0
    %1978 = vmatpush.msra.mxu0 0.0
    %1979 = vmatpush.msra.mxu0 0.0
    %1980 = vmatpush.msra.mxu0 0.0
    %1981 = vmatpush.msra.mxu0 %v1944
    %1982 = vmatpush.msra.mxu0 %v1927
    %1983 = vmatpush.msra.mxu0 %v1925
    %1984 = vmatpush.msra.mxu0 %v1923
    %1985 = vmatmul.f32.gmra.mxu0 %v1934
    %v1986 = vpop.f32.mrf.mxu0
    %v1987 = vadd.f32 0.0, %v1986
    %1988 = vmatmul.f32.gmra.mxu0 %v1937
    %v1989 = vpop.f32.mrf.mxu0
    %v1990 = vadd.f32 0.0, %v1989
    %1991 = vdwg.mxu0
    %v1992 = vld [vmem:[%s2] sm:$0x3]
    %v1993 = vld [vmem:[%s5] sm:$0xff]
    %v1994 = vld [vmem:[%s5 + $0x8] sm:$0xff]
    %v1995 = vld [vmem:[%s5 + $0x10] sm:$0xff]
    %v1996 = vld [vmem:[%s5 + $0x18] sm:$0xff]
    %v1997 = vld [vmem:[%s5 + $0x20] sm:$0xff]
    %v1998 = vld [vmem:[%s5 + $0x28] sm:$0xff]
    %v1999 = vld [vmem:[%s5 + $0x30] sm:$0xff]
    %v2000 = vld [vmem:[%s5 + $0x38] sm:$0xff]
    %v2001 = vld [vmem:[%s5 + $0x40] sm:$0xff]
    %v2002 = vld [vmem:[%s5 + $0x48] sm:$0xff]
    %v2003 = vld [vmem:[%s5 + $0x50] sm:$0xff]
    %v2004 = vld [vmem:[%s5 + $0x58] sm:$0xff]
    %v2005 = vld [vmem:[%s5 + $0x60] sm:$0xff]
    %v2006 = vld [vmem:[%s5 + $0x68] sm:$0xff]
    %v2007 = vld [vmem:[%s5 + $0x70] sm:$0xff]
    %v2008 = vld [vmem:[%s5 + $0x78] sm:$0xff]
    %v2009 = vld [vmem:[%s5 + $0x80] sm:$0xff]
    %v2010 = vld [vmem:[%s5 + $0x88] sm:$0xff]
    %v2011 = vld [vmem:[%s5 + $0x90] sm:$0xff]
    %v2012 = vld [vmem:[%s5 + $0x98] sm:$0xff]
    %v2013 = vld [vmem:[%s5 + $0xa0] sm:$0xff]
    %v2014 = vld [vmem:[%s5 + $0xa8] sm:$0xff]
    %v2015 = vld [vmem:[%s5 + $0xb0] sm:$0xff]
    %v2016 = vld [vmem:[%s5 + $0xb8] sm:$0xff]
    %v2017 = vld [vmem:[%s5 + $0xc0] sm:$0xff]
    %v2018 = vld [vmem:[%s5 + $0xc8] sm:$0xff]
    %v2019 = vld [vmem:[%s5 + $0xd0] sm:$0xff]
    %v2020 = vld [vmem:[%s5 + $0xd8] sm:$0xff]
    %v2021 = vld [vmem:[%s5 + $0xe0] sm:$0xff]
    %v2022 = vld [vmem:[%s5 + $0xe8] sm:$0xff]
    %v2023 = vld [vmem:[%s5 + $0xf0] sm:$0xff]
    %v2024 = vld [vmem:[%s5 + $0xf8] sm:$0xff]
    %v2025 = vld [vmem:[%s6] sm:$0xff]
    %v2026 = vld [vmem:[%s6 + $0x8] sm:$0xff]
    %v2027 = vadd.f32 %v1964, %v1967
    %v2028 = vrot.slane %v2027, 4
    %v2029 = vadd.f32 %v2027, %v2028
    %v2030 = vrot.slane %v2029, 2
    %v2031 = vadd.f32 %v2029, %v2030
    %v2032 = vrot.slane %v2031, 1
    %v2033 = vadd.f32 %v2031, %v2032
    %v2034 = vadd.f32 %v1987, %v1990
    %v2035 = vrot.slane %v2034, 4
    %v2036 = vadd.f32 %v2034, %v2035
    %v2037 = vrot.slane %v2036, 2
    %v2038 = vadd.f32 %v2036, %v2037
    %v2039 = vrot.slane %v2038, 1
    %v2040 = vadd.f32 %v2038, %v2039
    %2041 = vmatpush.msra.mxu0 %v2008
    %2042 = vmatpush.msra.mxu0 %v2007
    %2043 = vmatpush.msra.mxu0 %v2006
    %2044 = vmatpush.msra.mxu0 %v2005
    %2045 = vmatpush.msra.mxu0 %v2004
    %2046 = vmatpush.msra.mxu0 %v2003
    %2047 = vmatpush.msra.mxu0 %v2002
    %2048 = vmatpush.msra.mxu0 %v2001
    %2049 = vmatpush.msra.mxu0 %v2000
    %2050 = vmatpush.msra.mxu0 %v1999
    %2051 = vmatpush.msra.mxu0 %v1998
    %2052 = vmatpush.msra.mxu0 %v1997
    %2053 = vmatpush.msra.mxu0 %v1996
    %2054 = vmatpush.msra.mxu0 %v1995
    %2055 = vmatpush.msra.mxu0 %v1994
    %2056 = vmatpush.msra.mxu0 %v1993
    %2057 = vmatmul.f32.gmra.mxu0 %v2033
    %v2058 = vpop.f32.mrf.mxu0
    %v2059 = vadd.f32 0.0, %v2058
    %2060 = vdwg.mxu0
    %2061 = vmatpush.msra.mxu0 %v2024
    %2062 = vmatpush.msra.mxu0 %v2023
    %2063 = vmatpush.msra.mxu0 %v2022
    %2064 = vmatpush.msra.mxu0 %v2021
    %2065 = vmatpush.msra.mxu0 %v2020
    %2066 = vmatpush.msra.mxu0 %v2019
    %2067 = vmatpush.msra.mxu0 %v2018
    %2068 = vmatpush.msra.mxu0 %v2017
    %2069 = vmatpush.msra.mxu0 %v2016
    %2070 = vmatpush.msra.mxu0 %v2015
    %2071 = vmatpush.msra.mxu0 %v2014
    %2072 = vmatpush.msra.mxu0 %v2013
    %2073 = vmatpush.msra.mxu0 %v2012
    %2074 = vmatpush.msra.mxu0 %v2011
    %2075 = vmatpush.msra.mxu0 %v2010
    %2076 = vmatpush.msra.mxu0 %v2009
    %2077 = vmatmul.f32.gmra.mxu0 %v2040
    %v2078 = vpop.f32.mrf.mxu0
    %v2079 = vadd.f32 %v2059, %v2078
    %2080 = vdwg.mxu0
    %v2081 = vmul.f32 %v2079, 0.001953125
    %vm2082 = vcmask 64512
    %v2084 = vsel %vm2082, %v2081, 0
    %2086 = vmatpush.msra.mxu0 0.0
    %2087 = vmatpush.msra.mxu0 0.0
    %2088 = vmatpush.msra.mxu0 0.0
    %2089 = vmatpush.msra.mxu0 0.0
    %2090 = vmatpush.msra.mxu0 0.0
    %2091 = vmatpush.msra.mxu0 0.0
    %2092 = vmatpush.msra.mxu0 0.0
    %2093 = vmatpush.msra.mxu0 0.0
    %2094 = vmatpush.msra.mxu0 0.0
    %2095 = vmatpush.msra.mxu0 0.0
    %2096 = vmatpush.msra.mxu0 0.0
    %2097 = vmatpush.msra.mxu0 0.0
    %2098 = vmatpush.msra.mxu0 0.0
    %2099 = vmatpush.msra.mxu0 0.0
    %2100 = vmatpush.msra.mxu0 0.0
    %2101 = vmatpush.msra.mxu0 %v2025
    %2102 = vmatmul.f32.gmra.mxu0 %v2084
    %v2103 = vpop.f32.mrf.mxu0
    %v2104 = vadd.f32 0.0, %v2103
    %2105 = vdwg.mxu0
    %2106 = vmatpush.msra.mxu0 0.0
    %2107 = vmatpush.msra.mxu0 0.0
    %2108 = vmatpush.msra.mxu0 0.0
    %2109 = vmatpush.msra.mxu0 0.0
    %2110 = vmatpush.msra.mxu0 0.0
    %2111 = vmatpush.msra.mxu0 0.0
    %2112 = vmatpush.msra.mxu0 0.0
    %2113 = vmatpush.msra.mxu0 0.0
    %2114 = vmatpush.msra.mxu0 0.0
    %2115 = vmatpush.msra.mxu0 0.0
    %2116 = vmatpush.msra.mxu0 0.0
    %2117 = vmatpush.msra.mxu0 0.0
    %2118 = vmatpush.msra.mxu0 0.0
    %2119 = vmatpush.msra.mxu0 0.0
    %2120 = vmatpush.msra.mxu0 0.0
    %2121 = vmatpush.msra.mxu0 %v2026
    %2122 = vmatmul.f32.gmra.mxu0 %v2084
    %v2123 = vpop.f32.mrf.mxu0
    %v2124 = vadd.f32 0.0, %v2123
    %2125 = vdwg.mxu0
    %v2126 = vperm.slane %v2104, 0
    %v2127 = vperm.slane %v2124, 0
    %v2128 = vsub.f32 %v1964, %v2126
    %v2129 = vsub.f32 %v1987, %v2127
    %v2130 = vsub.f32 %v1967, %v2126
    %v2131 = vsub.f32 %v1990, %v2127
    %v2132 = vmul.f32 %v2128, %v2128
    %v2133 = vmul.f32 %v2129, %v2129
    %v2134 = vmul.f32 %v2130, %v2130
    %v2135 = vmul.f32 %v2131, %v2131
    %v2136 = vadd.f32 %v2132, %v2134
    %v2137 = vrot.slane %v2136, 4
    %v2138 = vadd.f32 %v2136, %v2137
    %v2139 = vrot.slane %v2138, 2
    %v2140 = vadd.f32 %v2138, %v2139
    %v2141 = vrot.slane %v2140, 1
    %v2142 = vadd.f32 %v2140, %v2141
    %v2143 = vadd.f32 %v2133, %v2135
    %v2144 = vrot.slane %v2143, 4
    %v2145 = vadd.f32 %v2143, %v2144
    %v2146 = vrot.slane %v2145, 2
    %v2147 = vadd.f32 %v2145, %v2146
    %v2148 = vrot.slane %v2147, 1
    %v2149 = vadd.f32 %v2147, %v2148
    %2150 = vmatpush.msra.mxu0 %v2008
    %2151 = vmatpush.msra.mxu0 %v2007
    %2152 = vmatpush.msra.mxu0 %v2006
    %2153 = vmatpush.msra.mxu0 %v2005
    %2154 = vmatpush.msra.mxu0 %v2004
    %2155 = vmatpush.msra.mxu0 %v2003
    %2156 = vmatpush.msra.mxu0 %v2002
    %2157 = vmatpush.msra.mxu0 %v2001
    %2158 = vmatpush.msra.mxu0 %v2000
    %2159 = vmatpush.msra.mxu0 %v1999
    %2160 = vmatpush.msra.mxu0 %v1998
    %2161 = vmatpush.msra.mxu0 %v1997
    %2162 = vmatpush.msra.mxu0 %v1996
    %2163 = vmatpush.msra.mxu0 %v1995
    %2164 = vmatpush.msra.mxu0 %v1994
    %2165 = vmatpush.msra.mxu0 %v1993
    %2166 = vmatmul.f32.gmra.mxu0 %v2142
    %v2167 = vpop.f32.mrf.mxu0
    %v2168 = vadd.f32 0.0, %v2167
    %2169 = vdwg.mxu0
    %2170 = vmatpush.msra.mxu0 %v2024
    %2171 = vmatpush.msra.mxu0 %v2023
    %2172 = vmatpush.msra.mxu0 %v2022
    %2173 = vmatpush.msra.mxu0 %v2021
    %2174 = vmatpush.msra.mxu0 %v2020
    %2175 = vmatpush.msra.mxu0 %v2019
    %2176 = vmatpush.msra.mxu0 %v2018
    %2177 = vmatpush.msra.mxu0 %v2017
    %2178 = vmatpush.msra.mxu0 %v2016
    %2179 = vmatpush.msra.mxu0 %v2015
    %2180 = vmatpush.msra.mxu0 %v2014
    %2181 = vmatpush.msra.mxu0 %v2013
    %2182 = vmatpush.msra.mxu0 %v2012
    %2183 = vmatpush.msra.mxu0 %v2011
    %2184 = vmatpush.msra.mxu0 %v2010
    %2185 = vmatpush.msra.mxu0 %v2009
    %2186 = vmatmul.f32.gmra.mxu0 %v2149
    %v2187 = vpop.f32.mrf.mxu0
    %v2188 = vadd.f32 %v2168, %v2187
    %2189 = vdwg.mxu0
    %v2190 = vmul.f32 %v2188, 0.001953125
    %v2191 = vadd.f32 %v2190, 1e-05
    %v2192 = vrsqrt.pop %v2191
    %v2193 = vmul.f32 %v2192, %v2191
    %v2194 = vmul.f32 %v2193, %v2192
    %v2195 = vmul.f32 0.5, %v2194
    %v2196 = vsub.f32 1.5, %v2195
    %v2197 = vmul.f32 %v2192, %v2196
    %vm2198 = vweird.f32 %v2191
    %vm2199 = vweird.f32 %v2192
    %vm2200 = vmor %vm2198, %vm2199
    %v2201 = vsel %vm2200, %v2192, %v2197
    %v2202 = vmul.f32 %v1992, %v2201
    %v2204 = vsel %vm2082, %v2202, 0
    %2206 = vmatpush.msra.mxu0 0.0
    %2207 = vmatpush.msra.mxu0 0.0
    %2208 = vmatpush.msra.mxu0 0.0
    %2209 = vmatpush.msra.mxu0 0.0
    %2210 = vmatpush.msra.mxu0 0.0
    %2211 = vmatpush.msra.mxu0 0.0
    %2212 = vmatpush.msra.mxu0 0.0
    %2213 = vmatpush.msra.mxu0 0.0
    %2214 = vmatpush.msra.mxu0 0.0
    %2215 = vmatpush.msra.mxu0 0.0
    %2216 = vmatpush.msra.mxu0 0.0
    %2217 = vmatpush.msra.mxu0 0.0
    %2218 = vmatpush.msra.mxu0 0.0
    %2219 = vmatpush.msra.mxu0 0.0
    %2220 = vmatpush.msra.mxu0 0.0
    %2221 = vmatpush.msra.mxu0 %v2025
    %2222 = vmatmul.f32.gmra.mxu0 %v2204
    %v2223 = vpop.f32.mrf.mxu0
    %v2224 = vadd.f32 0.0, %v2223
    %2225 = vdwg.mxu0
    %2226 = vmatpush.msra.mxu0 0.0
    %2227 = vmatpush.msra.mxu0 0.0
    %2228 = vmatpush.msra.mxu0 0.0
    %2229 = vmatpush.msra.mxu0 0.0
    %2230 = vmatpush.msra.mxu0 0.0
    %2231 = vmatpush.msra.mxu0 0.0
    %2232 = vmatpush.msra.mxu0 0.0
    %2233 = vmatpush.msra.mxu0 0.0
    %2234 = vmatpush.msra.mxu0 0.0
    %2235 = vmatpush.msra.mxu0 0.0
    %2236 = vmatpush.msra.mxu0 0.0
    %2237 = vmatpush.msra.mxu0 0.0
    %2238 = vmatpush.msra.mxu0 0.0
    %2239 = vmatpush.msra.mxu0 0.0
    %2240 = vmatpush.msra.mxu0 0.0
    %2241 = vmatpush.msra.mxu0 %v2026
    %2242 = vmatmul.f32.gmra.mxu0 %v2204
    %v2243 = vpop.f32.mrf.mxu0
    %v2244 = vadd.f32 0.0, %v2243
    %2245 = vdwg.mxu0
    %v2246 = vperm.slane %v2224, 0
    %v2247 = vperm.slane %v2244, 0
    %v2248 = vmul.f32 %v2128, %v2246
    %v2249 = vmul.f32 %v2129, %v2247
    %v2250 = vmul.f32 %v2130, %v2246
    %v2251 = vmul.f32 %v2131, %v2247
    %v2253 = vrot.slane %v1992, 1
    %v2254 = vsel %vm2082, %v2253, 0
    %2256 = vmatpush.msra.mxu0 0.0
    %2257 = vmatpush.msra.mxu0 0.0
    %2258 = vmatpush.msra.mxu0 0.0
    %2259 = vmatpush.msra.mxu0 0.0
    %2260 = vmatpush.msra.mxu0 0.0
    %2261 = vmatpush.msra.mxu0 0.0
    %2262 = vmatpush.msra.mxu0 0.0
    %2263 = vmatpush.msra.mxu0 0.0
    %2264 = vmatpush.msra.mxu0 0.0
    %2265 = vmatpush.msra.mxu0 0.0
    %2266 = vmatpush.msra.mxu0 0.0
    %2267 = vmatpush.msra.mxu0 0.0
    %2268 = vmatpush.msra.mxu0 0.0
    %2269 = vmatpush.msra.mxu0 0.0
    %2270 = vmatpush.msra.mxu0 0.0
    %2271 = vmatpush.msra.mxu0 %v2025
    %2272 = vmatmul.f32.gmra.mxu0 %v2254
    %v2273 = vpop.f32.mrf.mxu0
    %v2274 = vadd.f32 0.0, %v2273
    %2275 = vdwg.mxu0
    %2276 = vmatpush.msra.mxu0 0.0
    %2277 = vmatpush.msra.mxu0 0.0
    %2278 = vmatpush.msra.mxu0 0.0
    %2279 = vmatpush.msra.mxu0 0.0
    %2280 = vmatpush.msra.mxu0 0.0
    %2281 = vmatpush.msra.mxu0 0.0
    %2282 = vmatpush.msra.mxu0 0.0
    %2283 = vmatpush.msra.mxu0 0.0
    %2284 = vmatpush.msra.mxu0 0.0
    %2285 = vmatpush.msra.mxu0 0.0
    %2286 = vmatpush.msra.mxu0 0.0
    %2287 = vmatpush.msra.mxu0 0.0
    %2288 = vmatpush.msra.mxu0 0.0
    %2289 = vmatpush.msra.mxu0 0.0
    %2290 = vmatpush.msra.mxu0 0.0
    %2291 = vmatpush.msra.mxu0 %v2026
    %2292 = vmatmul.f32.gmra.mxu0 %v2254
    %v2293 = vpop.f32.mrf.mxu0
    %v2294 = vadd.f32 0.0, %v2293
    %2295 = vdwg.mxu0
    %v2296 = vperm.slane %v2274, 0
    %v2297 = vperm.slane %v2294, 0
    %v2298 = vadd.f32 %v2248, %v2296
    %v2299 = vadd.f32 %v2249, %v2297
    %v2300 = vadd.f32 %v2250, %v2296
    %v2301 = vadd.f32 %v2251, %v2297
    %v2302 = vmax.f32 %v2298, 0.0
    %v2303 = vmax.f32 %v2299, 0.0
    %v2304 = vmax.f32 %v2300, 0.0
    %v2305 = vmax.f32 %v2301, 0.0
    %v2306 = vld [vmem:[%s7] sm:$0xff]
    %vm2307 = vcmask 130048
    %v2309 = vsel %vm2307, %v2306, 0
    %2311 = vmatpush.msra.mxu0 0.0
    %2312 = vmatpush.msra.mxu0 0.0
    %2313 = vmatpush.msra.mxu0 0.0
    %2314 = vmatpush.msra.mxu0 0.0
    %2315 = vmatpush.msra.mxu0 0.0
    %2316 = vmatpush.msra.mxu0 0.0
    %2317 = vmatpush.msra.mxu0 0.0
    %2318 = vmatpush.msra.mxu0 0.0
    %2319 = vmatpush.msra.mxu0 0.0
    %2320 = vmatpush.msra.mxu0 0.0
    %2321 = vmatpush.msra.mxu0 0.0
    %2322 = vmatpush.msra.mxu0 0.0
    %2323 = vmatpush.msra.mxu0 0.0
    %2324 = vmatpush.msra.mxu0 0.0
    %2325 = vmatpush.msra.mxu0 %v2304
    %2326 = vmatpush.msra.mxu0 %v2302
    %2327 = vmatmul.f32.gmra.mxu0 %v2309
    %v2328 = vpop.f32.mrf.mxu0
    %v2329 = vadd.f32 0.0, %v2328
    %2330 = vdwg.mxu0
    %2331 = vmatpush.msra.mxu0 0.0
    %2332 = vmatpush.msra.mxu0 0.0
    %2333 = vmatpush.msra.mxu0 0.0
    %2334 = vmatpush.msra.mxu0 0.0
    %2335 = vmatpush.msra.mxu0 0.0
    %2336 = vmatpush.msra.mxu0 0.0
    %2337 = vmatpush.msra.mxu0 0.0
    %2338 = vmatpush.msra.mxu0 0.0
    %2339 = vmatpush.msra.mxu0 0.0
    %2340 = vmatpush.msra.mxu0 0.0
    %2341 = vmatpush.msra.mxu0 0.0
    %2342 = vmatpush.msra.mxu0 0.0
    %2343 = vmatpush.msra.mxu0 0.0
    %2344 = vmatpush.msra.mxu0 0.0
    %2345 = vmatpush.msra.mxu0 %v2305
    %2346 = vmatpush.msra.mxu0 %v2303
    %2347 = vmatmul.f32.gmra.mxu0 %v2309
    %v2348 = vpop.f32.mrf.mxu0
    %v2349 = vadd.f32 0.0, %v2348
    %2350 = vdwg.mxu0
    %s2351 = scalar_lea.vmem %s7, 8
    %v2352 = vld [vmem:[%s2351] sm:$0xff]
    %v2354 = vsel %vm2307, %v2352, 0
    %2356 = vmatpush.msra.mxu0 0.0
    %2357 = vmatpush.msra.mxu0 0.0
    %2358 = vmatpush.msra.mxu0 0.0
    %2359 = vmatpush.msra.mxu0 0.0
    %2360 = vmatpush.msra.mxu0 0.0
    %2361 = vmatpush.msra.mxu0 0.0
    %2362 = vmatpush.msra.mxu0 0.0
    %2363 = vmatpush.msra.mxu0 0.0
    %2364 = vmatpush.msra.mxu0 0.0
    %2365 = vmatpush.msra.mxu0 0.0
    %2366 = vmatpush.msra.mxu0 0.0
    %2367 = vmatpush.msra.mxu0 0.0
    %2368 = vmatpush.msra.mxu0 0.0
    %2369 = vmatpush.msra.mxu0 0.0
    %2370 = vmatpush.msra.mxu0 %v2304
    %2371 = vmatpush.msra.mxu0 %v2302
    %2372 = vmatmul.f32.gmra.mxu0 %v2354
    %v2373 = vpop.f32.mrf.mxu0
    %v2374 = vadd.f32 0.0, %v2373
    %2375 = vdwg.mxu0
    %2376 = vmatpush.msra.mxu0 0.0
    %2377 = vmatpush.msra.mxu0 0.0
    %2378 = vmatpush.msra.mxu0 0.0
    %2379 = vmatpush.msra.mxu0 0.0
    %2380 = vmatpush.msra.mxu0 0.0
    %2381 = vmatpush.msra.mxu0 0.0
    %2382 = vmatpush.msra.mxu0 0.0
    %2383 = vmatpush.msra.mxu0 0.0
    %2384 = vmatpush.msra.mxu0 0.0
    %2385 = vmatpush.msra.mxu0 0.0
    %2386 = vmatpush.msra.mxu0 0.0
    %2387 = vmatpush.msra.mxu0 0.0
    %2388 = vmatpush.msra.mxu0 0.0
    %2389 = vmatpush.msra.mxu0 0.0
    %2390 = vmatpush.msra.mxu0 %v2305
    %2391 = vmatpush.msra.mxu0 %v2303
    %2392 = vmatmul.f32.gmra.mxu0 %v2354
    %v2393 = vpop.f32.mrf.mxu0
    %v2394 = vadd.f32 0.0, %v2393
    %2395 = vdwg.mxu0
    %v2396 = vmax.f32 %v2329, %v2374
    %v2397 = vmax.f32 %v2349, %v2394
    %s2398 = scalar_lea.vmem %s7, 16
    %v2399 = vld [vmem:[%s2398] sm:$0xff]
    %v2401 = vsel %vm2307, %v2399, 0
    %2403 = vmatpush.msra.mxu0 0.0
    %2404 = vmatpush.msra.mxu0 0.0
    %2405 = vmatpush.msra.mxu0 0.0
    %2406 = vmatpush.msra.mxu0 0.0
    %2407 = vmatpush.msra.mxu0 0.0
    %2408 = vmatpush.msra.mxu0 0.0
    %2409 = vmatpush.msra.mxu0 0.0
    %2410 = vmatpush.msra.mxu0 0.0
    %2411 = vmatpush.msra.mxu0 0.0
    %2412 = vmatpush.msra.mxu0 0.0
    %2413 = vmatpush.msra.mxu0 0.0
    %2414 = vmatpush.msra.mxu0 0.0
    %2415 = vmatpush.msra.mxu0 0.0
    %2416 = vmatpush.msra.mxu0 0.0
    %2417 = vmatpush.msra.mxu0 %v2304
    %2418 = vmatpush.msra.mxu0 %v2302
    %2419 = vmatmul.f32.gmra.mxu0 %v2401
    %v2420 = vpop.f32.mrf.mxu0
    %v2421 = vadd.f32 0.0, %v2420
    %2422 = vdwg.mxu0
    %2423 = vmatpush.msra.mxu0 0.0
    %2424 = vmatpush.msra.mxu0 0.0
    %2425 = vmatpush.msra.mxu0 0.0
    %2426 = vmatpush.msra.mxu0 0.0
    %2427 = vmatpush.msra.mxu0 0.0
    %2428 = vmatpush.msra.mxu0 0.0
    %2429 = vmatpush.msra.mxu0 0.0
    %2430 = vmatpush.msra.mxu0 0.0
    %2431 = vmatpush.msra.mxu0 0.0
    %2432 = vmatpush.msra.mxu0 0.0
    %2433 = vmatpush.msra.mxu0 0.0
    %2434 = vmatpush.msra.mxu0 0.0
    %2435 = vmatpush.msra.mxu0 0.0
    %2436 = vmatpush.msra.mxu0 0.0
    %2437 = vmatpush.msra.mxu0 %v2305
    %2438 = vmatpush.msra.mxu0 %v2303
    %2439 = vmatmul.f32.gmra.mxu0 %v2401
    %v2440 = vpop.f32.mrf.mxu0
    %v2441 = vadd.f32 0.0, %v2440
    %2442 = vdwg.mxu0
    %v2443 = vmax.f32 %v2396, %v2421
    %v2444 = vmax.f32 %v2397, %v2441
    %v2445 = vld [vmem:[#allocation5] sm:$0xff]
    %v2446 = vld [vmem:[#allocation5 + $0x8] sm:$0xff]
    %v2447 = vld [vmem:[#allocation5 + $0x10] sm:$0xff]
    %v2448 = vld [vmem:[#allocation5 + $0x18] sm:$0xff]
    %v2449 = vld [vmem:[#allocation5 + $0x20] sm:$0xff]
    %v2450 = vld [vmem:[#allocation5 + $0x28] sm:$0xff]
    %v2451 = vld [vmem:[#allocation5 + $0x30] sm:$0xff]
    %v2452 = vld [vmem:[#allocation5 + $0x38] sm:$0xff]
    %v2453 = vld [vmem:[#allocation5 + $0x40] sm:$0xff]
    %v2454 = vld [vmem:[#allocation5 + $0x48] sm:$0xff]
    %v2455 = vld [vmem:[#allocation5 + $0x50] sm:$0xff]
    %v2456 = vld [vmem:[#allocation5 + $0x58] sm:$0xff]
    %v2457 = vld [vmem:[#allocation5 + $0x60] sm:$0xff]
    %v2458 = vld [vmem:[#allocation5 + $0x68] sm:$0xff]
    %v2459 = vld [vmem:[#allocation5 + $0x70] sm:$0xff]
    %v2460 = vld [vmem:[#allocation5 + $0x78] sm:$0xff]
    %v2461 = vld [vmem:[#allocation5 + $0x80] sm:$0xff]
    %v2462 = vld [vmem:[#allocation5 + $0x88] sm:$0xff]
    %v2463 = vld [vmem:[#allocation5 + $0x90] sm:$0xff]
    %v2464 = vld [vmem:[#allocation5 + $0x98] sm:$0xff]
    %v2465 = vld [vmem:[#allocation5 + $0xa0] sm:$0xff]
    %v2466 = vld [vmem:[#allocation5 + $0xa8] sm:$0xff]
    %v2467 = vld [vmem:[#allocation5 + $0xb0] sm:$0xff]
    %v2468 = vld [vmem:[#allocation5 + $0xb8] sm:$0xff]
    %v2469 = vld [vmem:[#allocation5 + $0xc0] sm:$0xff]
    %v2470 = vld [vmem:[#allocation5 + $0xc8] sm:$0xff]
    %v2471 = vld [vmem:[#allocation5 + $0xd0] sm:$0xff]
    %v2472 = vld [vmem:[#allocation5 + $0xd8] sm:$0xff]
    %v2473 = vld [vmem:[#allocation5 + $0xe0] sm:$0xff]
    %v2474 = vld [vmem:[#allocation5 + $0xe8] sm:$0xff]
    %v2475 = vld [vmem:[#allocation5 + $0xf0] sm:$0xff]
    %v2476 = vld [vmem:[#allocation5 + $0xf8] sm:$0xff]
    %2477 = vmatpush.msra.mxu0 %v2460
    %2478 = vmatpush.msra.mxu0 %v2459
    %2479 = vmatpush.msra.mxu0 %v2458
    %2480 = vmatpush.msra.mxu0 %v2457
    %2481 = vmatpush.msra.mxu0 %v2456
    %2482 = vmatpush.msra.mxu0 %v2455
    %2483 = vmatpush.msra.mxu0 %v2454
    %2484 = vmatpush.msra.mxu0 %v2453
    %2485 = vmatpush.msra.mxu0 %v2452
    %2486 = vmatpush.msra.mxu0 %v2451
    %2487 = vmatpush.msra.mxu0 %v2450
    %2488 = vmatpush.msra.mxu0 %v2449
    %2489 = vmatpush.msra.mxu0 %v2448
    %2490 = vmatpush.msra.mxu0 %v2447
    %2491 = vmatpush.msra.mxu0 %v2446
    %2492 = vmatpush.msra.mxu0 %v2445
    %2493 = vmatmul.f32.gmra.mxu0 %v2443
    %v2494 = vpop.f32.mrf.mxu0
    %v2495 = vadd.f32 0.0, %v2494
    %2496 = vdwg.mxu0
    %2497 = vmatpush.msra.mxu0 %v2476
    %2498 = vmatpush.msra.mxu0 %v2475
    %2499 = vmatpush.msra.mxu0 %v2474
    %2500 = vmatpush.msra.mxu0 %v2473
    %2501 = vmatpush.msra.mxu0 %v2472
    %2502 = vmatpush.msra.mxu0 %v2471
    %2503 = vmatpush.msra.mxu0 %v2470
    %2504 = vmatpush.msra.mxu0 %v2469
    %2505 = vmatpush.msra.mxu0 %v2468
    %2506 = vmatpush.msra.mxu0 %v2467
    %2507 = vmatpush.msra.mxu0 %v2466
    %2508 = vmatpush.msra.mxu0 %v2465
    %2509 = vmatpush.msra.mxu0 %v2464
    %2510 = vmatpush.msra.mxu0 %v2463
    %2511 = vmatpush.msra.mxu0 %v2462
    %2512 = vmatpush.msra.mxu0 %v2461
    %2513 = vmatmul.f32.gmra.mxu0 %v2444
    %v2514 = vpop.f32.mrf.mxu0
    %v2515 = vadd.f32 %v2495, %v2514
    %2516 = vdwg.mxu0
    %s2517 = scalar_lea.vmem [#allocation5], 256
    %v2518 = vld [vmem:[%s2517] sm:$0xff]
    %v2519 = vld [vmem:[%s2517 + $0x8] sm:$0xff]
    %v2520 = vld [vmem:[%s2517 + $0x10] sm:$0xff]
    %v2521 = vld [vmem:[%s2517 + $0x18] sm:$0xff]
    %v2522 = vld [vmem:[%s2517 + $0x20] sm:$0xff]
    %v2523 = vld [vmem:[%s2517 + $0x28] sm:$0xff]
    %v2524 = vld [vmem:[%s2517 + $0x30] sm:$0xff]
    %v2525 = vld [vmem:[%s2517 + $0x38] sm:$0xff]
    %v2526 = vld [vmem:[%s2517 + $0x40] sm:$0xff]
    %v2527 = vld [vmem:[%s2517 + $0x48] sm:$0xff]
    %v2528 = vld [vmem:[%s2517 + $0x50] sm:$0xff]
    %v2529 = vld [vmem:[%s2517 + $0x58] sm:$0xff]
    %v2530 = vld [vmem:[%s2517 + $0x60] sm:$0xff]
    %v2531 = vld [vmem:[%s2517 + $0x68] sm:$0xff]
    %v2532 = vld [vmem:[%s2517 + $0x70] sm:$0xff]
    %v2533 = vld [vmem:[%s2517 + $0x78] sm:$0xff]
    %v2534 = vld [vmem:[%s2517 + $0x80] sm:$0xff]
    %v2535 = vld [vmem:[%s2517 + $0x88] sm:$0xff]
    %v2536 = vld [vmem:[%s2517 + $0x90] sm:$0xff]
    %v2537 = vld [vmem:[%s2517 + $0x98] sm:$0xff]
    %v2538 = vld [vmem:[%s2517 + $0xa0] sm:$0xff]
    %v2539 = vld [vmem:[%s2517 + $0xa8] sm:$0xff]
    %v2540 = vld [vmem:[%s2517 + $0xb0] sm:$0xff]
    %v2541 = vld [vmem:[%s2517 + $0xb8] sm:$0xff]
    %v2542 = vld [vmem:[%s2517 + $0xc0] sm:$0xff]
    %v2543 = vld [vmem:[%s2517 + $0xc8] sm:$0xff]
    %v2544 = vld [vmem:[%s2517 + $0xd0] sm:$0xff]
    %v2545 = vld [vmem:[%s2517 + $0xd8] sm:$0xff]
    %v2546 = vld [vmem:[%s2517 + $0xe0] sm:$0xff]
    %v2547 = vld [vmem:[%s2517 + $0xe8] sm:$0xff]
    %v2548 = vld [vmem:[%s2517 + $0xf0] sm:$0xff]
    %v2549 = vld [vmem:[%s2517 + $0xf8] sm:$0xff]
    %2550 = vmatpush.msra.mxu0 %v2533
    %2551 = vmatpush.msra.mxu0 %v2532
    %2552 = vmatpush.msra.mxu0 %v2531
    %2553 = vmatpush.msra.mxu0 %v2530
    %2554 = vmatpush.msra.mxu0 %v2529
    %2555 = vmatpush.msra.mxu0 %v2528
    %2556 = vmatpush.msra.mxu0 %v2527
    %2557 = vmatpush.msra.mxu0 %v2526
    %2558 = vmatpush.msra.mxu0 %v2525
    %2559 = vmatpush.msra.mxu0 %v2524
    %2560 = vmatpush.msra.mxu0 %v2523
    %2561 = vmatpush.msra.mxu0 %v2522
    %2562 = vmatpush.msra.mxu0 %v2521
    %2563 = vmatpush.msra.mxu0 %v2520
    %2564 = vmatpush.msra.mxu0 %v2519
    %2565 = vmatpush.msra.mxu0 %v2518
    %2566 = vmatmul.f32.gmra.mxu0 %v2443
    %v2567 = vpop.f32.mrf.mxu0
    %v2568 = vadd.f32 0.0, %v2567
    %2569 = vdwg.mxu0
    %2570 = vmatpush.msra.mxu0 %v2549
    %2571 = vmatpush.msra.mxu0 %v2548
    %2572 = vmatpush.msra.mxu0 %v2547
    %2573 = vmatpush.msra.mxu0 %v2546
    %2574 = vmatpush.msra.mxu0 %v2545
    %2575 = vmatpush.msra.mxu0 %v2544
    %2576 = vmatpush.msra.mxu0 %v2543
    %2577 = vmatpush.msra.mxu0 %v2542
    %2578 = vmatpush.msra.mxu0 %v2541
    %2579 = vmatpush.msra.mxu0 %v2540
    %2580 = vmatpush.msra.mxu0 %v2539
    %2581 = vmatpush.msra.mxu0 %v2538
    %2582 = vmatpush.msra.mxu0 %v2537
    %2583 = vmatpush.msra.mxu0 %v2536
    %2584 = vmatpush.msra.mxu0 %v2535
    %2585 = vmatpush.msra.mxu0 %v2534
    %2586 = vmatmul.f32.gmra.mxu0 %v2444
    %v2587 = vpop.f32.mrf.mxu0
    %v2588 = vadd.f32 %v2568, %v2587
    %2589 = vdwg.mxu0
    %v2590 = vmax.f32 %v2515, %v2588
    %s2591 = scalar_lea.vmem [#allocation5], 512
    %v2592 = vld [vmem:[%s2591] sm:$0xff]
    %v2593 = vld [vmem:[%s2591 + $0x8] sm:$0xff]
    %v2594 = vld [vmem:[%s2591 + $0x10] sm:$0xff]
    %v2595 = vld [vmem:[%s2591 + $0x18] sm:$0xff]
    %v2596 = vld [vmem:[%s2591 + $0x20] sm:$0xff]
    %v2597 = vld [vmem:[%s2591 + $0x28] sm:$0xff]
    %v2598 = vld [vmem:[%s2591 + $0x30] sm:$0xff]
    %v2599 = vld [vmem:[%s2591 + $0x38] sm:$0xff]
    %v2600 = vld [vmem:[%s2591 + $0x40] sm:$0xff]
    %v2601 = vld [vmem:[%s2591 + $0x48] sm:$0xff]
    %v2602 = vld [vmem:[%s2591 + $0x50] sm:$0xff]
    %v2603 = vld [vmem:[%s2591 + $0x58] sm:$0xff]
    %v2604 = vld [vmem:[%s2591 + $0x60] sm:$0xff]
    %v2605 = vld [vmem:[%s2591 + $0x68] sm:$0xff]
    %v2606 = vld [vmem:[%s2591 + $0x70] sm:$0xff]
    %v2607 = vld [vmem:[%s2591 + $0x78] sm:$0xff]
    %v2608 = vld [vmem:[%s2591 + $0x80] sm:$0xff]
    %v2609 = vld [vmem:[%s2591 + $0x88] sm:$0xff]
    %v2610 = vld [vmem:[%s2591 + $0x90] sm:$0xff]
    %v2611 = vld [vmem:[%s2591 + $0x98] sm:$0xff]
    %v2612 = vld [vmem:[%s2591 + $0xa0] sm:$0xff]
    %v2613 = vld [vmem:[%s2591 + $0xa8] sm:$0xff]
    %v2614 = vld [vmem:[%s2591 + $0xb0] sm:$0xff]
    %v2615 = vld [vmem:[%s2591 + $0xb8] sm:$0xff]
    %v2616 = vld [vmem:[%s2591 + $0xc0] sm:$0xff]
    %v2617 = vld [vmem:[%s2591 + $0xc8] sm:$0xff]
    %v2618 = vld [vmem:[%s2591 + $0xd0] sm:$0xff]
    %v2619 = vld [vmem:[%s2591 + $0xd8] sm:$0xff]
    %v2620 = vld [vmem:[%s2591 + $0xe0] sm:$0xff]
    %v2621 = vld [vmem:[%s2591 + $0xe8] sm:$0xff]
    %v2622 = vld [vmem:[%s2591 + $0xf0] sm:$0xff]
    %v2623 = vld [vmem:[%s2591 + $0xf8] sm:$0xff]
    %2624 = vmatpush.msra.mxu0 %v2607
    %2625 = vmatpush.msra.mxu0 %v2606
    %2626 = vmatpush.msra.mxu0 %v2605
    %2627 = vmatpush.msra.mxu0 %v2604
    %2628 = vmatpush.msra.mxu0 %v2603
    %2629 = vmatpush.msra.mxu0 %v2602
    %2630 = vmatpush.msra.mxu0 %v2601
    %2631 = vmatpush.msra.mxu0 %v2600
    %2632 = vmatpush.msra.mxu0 %v2599
    %2633 = vmatpush.msra.mxu0 %v2598
    %2634 = vmatpush.msra.mxu0 %v2597
    %2635 = vmatpush.msra.mxu0 %v2596
    %2636 = vmatpush.msra.mxu0 %v2595
    %2637 = vmatpush.msra.mxu0 %v2594
    %2638 = vmatpush.msra.mxu0 %v2593
    %2639 = vmatpush.msra.mxu0 %v2592
    %2640 = vmatmul.f32.gmra.mxu0 %v2443
    %v2641 = vpop.f32.mrf.mxu0
    %v2642 = vadd.f32 0.0, %v2641
    %2643 = vdwg.mxu0
    %2644 = vmatpush.msra.mxu0 %v2623
    %2645 = vmatpush.msra.mxu0 %v2622
    %2646 = vmatpush.msra.mxu0 %v2621
    %2647 = vmatpush.msra.mxu0 %v2620
    %2648 = vmatpush.msra.mxu0 %v2619
    %2649 = vmatpush.msra.mxu0 %v2618
    %2650 = vmatpush.msra.mxu0 %v2617
    %2651 = vmatpush.msra.mxu0 %v2616
    %2652 = vmatpush.msra.mxu0 %v2615
    %2653 = vmatpush.msra.mxu0 %v2614
    %2654 = vmatpush.msra.mxu0 %v2613
    %2655 = vmatpush.msra.mxu0 %v2612
    %2656 = vmatpush.msra.mxu0 %v2611
    %2657 = vmatpush.msra.mxu0 %v2610
    %2658 = vmatpush.msra.mxu0 %v2609
    %2659 = vmatpush.msra.mxu0 %v2608
    %2660 = vmatmul.f32.gmra.mxu0 %v2444
    %v2661 = vpop.f32.mrf.mxu0
    %v2662 = vadd.f32 %v2642, %v2661
    %2663 = vdwg.mxu0
    %v2664 = vmax.f32 %v2590, %v2662
    %2665 = vst [vmem:[#allocation7] sm:$0xff] %v2664
    // Predicated region
    $region46: #{tpu_custom_call.1} parent=1 // pred_check
      _
    $region47: #{tpu_custom_call.1} parent=1 // pred_check_branch
      %2667 = sbr.rel (0) target = $region49
    $region48: #{tpu_custom_call.1} parent=1 // pred_region
      %2669 = vsyncadd [#allocation4], 0
      %s2671 = sshll.u32 [#allocation7], 4
      %s2672 = int_to_ptr.vmem [resolvable:$true] %s2671
      %s2673 = sshll.u32 %s9, 4
      %s2674 = int_to_ptr.hbm [resolvable:$true] %s2673
      %2676 = dma.vmem_to_hbm [thread:$0]  %s2672, 128, %s2674, [#allocation4]
    $region49: #{tpu_custom_call.1} parent=1 // pred_fallthru
      _
    // Predicated region
    $region50: #{tpu_custom_call.1} parent=1 // pred_check
      _
    $region51: #{tpu_custom_call.1} parent=1 // pred_check_branch
      %2678 = sbr.rel (0) target = $region53
    $region52: #{tpu_custom_call.1} parent=1 // pred_region
      %2680 = dma.done [#allocation4], 128
    $region53: #{tpu_custom_call.1} parent=1 // pred_fallthru
      _
    %2681 = vsyncpa [#allocation3], 1
    %2682 = vsyncpa [#allocation6], 1
    %2683 = vsyncpa [#allocation4], 1

</llo_original>
